<compile_context>
chip_gen: v5e
topology: v5e:2x2
jax: 0.10.0
libtpu: 0.0.40
codegen_flags: <defaults>
</compile_context>

<pallas_src>
import jax
import jax.numpy as jnp
from jax.experimental import pallas as pl
from jax.experimental.pallas import tpu as pltpu

KSIZE = 7
PAD = KSIZE // 2


def _vmem_budget_bytes():
    """Generation-aware scoped-VMEM budget (~109 MiB on v5e/v6e, ~54 MiB on v7x)."""
    phys = 64 * 1024 * 1024  # conservative default = v7x per-TC VMEM
    try:
        info = pltpu.get_tpu_info()
        cap = int(getattr(info, "vmem_capacity_bytes", 0) or 0)
        if cap > 0:
            phys = cap
    except Exception:
        pass
    return max(int(phys * 0.85), 16 * 1024 * 1024)


def _channel_tile(C, S, itemsize, vmem_budget):
    """Largest channel tile whose double-buffered x slab + scratch + conv-epilogue
    temporaries fit the VMEM budget.  Multiple of the dtype's sublane packing
    (8 for f32, 16 for bf16) unless it covers all of C (block == full dim)."""
    gran = max(8, 32 // itemsize)
    # output double-buffer + sum/max scratch + col/row masks + ~16 epilogue planes
    reserve = 32 * S * 4
    avail = max(vmem_budget - reserve, 2 * S * itemsize * gran)
    cap = avail // (2 * S * itemsize)            # x is double-buffered by Pallas
    if cap >= C:
        return C
    return min(max((int(cap) // gran) * gran, gran), C)


def _accumulate_conv(w_ref, shifted_w, shift_h):
    """acc = sum_{ci,kh,kw} w[ci,kh,kw] * shift_h(shifted_w(ci, kw-PAD), kh-PAD).

    The 7 W-direction shifts per pooled channel are computed once and shared
    across all kh taps (14 shifts total); the 7 per-kh partial sums are then
    shifted in H (6 shifts).  t[kh] is initialized from its first tap."""
    t = [None] * KSIZE
    for ci in range(2):
        for kw in range(KSIZE):
            s = shifted_w(ci, kw - PAD)
            for kh in range(KSIZE):
                wv = w_ref[ci * KSIZE * KSIZE + kh * KSIZE + kw]
                contrib = wv * s
                t[kh] = contrib if t[kh] is None else t[kh] + contrib
    acc = t[PAD]
    for kh in range(KSIZE):
        if kh != PAD:
            acc = acc + shift_h(t[kh], kh - PAD)
    return acc


def _make_flat_kernel(C, ct, H, W):
    """Pooling over lane-dense (ct, H*W) tiles; conv in flattened (1, H*W) space."""
    S = H * W
    ragged = (C % ct) != 0

    def kernel(w_ref, x_ref, col_ref, row_ref, o_ref, sum_ref, max_ref):
        c = pl.program_id(1)
        nprog = pl.num_programs(1)

        x = x_ref[...].astype(jnp.float32)                       # (ct, S)
        if ragged:
            ch = jax.lax.broadcasted_iota(jnp.int32, x.shape, 0) + c * ct
            valid = ch < C
            xs = jnp.where(valid, x, 0.0)
            xm = jnp.where(valid, x, -jnp.inf)
        else:
            xs, xm = x, x
        tile_sum = jnp.sum(xs, axis=0, keepdims=True)            # (1, S)
        tile_max = jnp.max(xm, axis=0, keepdims=True)            # (1, S)

        @pl.when(c == 0)
        def _():
            sum_ref[...] = tile_sum
            max_ref[...] = tile_max

        @pl.when(c > 0)
        def _():
            sum_ref[...] = sum_ref[...] + tile_sum
            max_ref[...] = jnp.maximum(max_ref[...], tile_max)

        @pl.when(c == nprog - 1)
        def _():
            col = col_ref[...]                                   # (1, S) w index
            row = row_ref[...]                                   # (1, S) h index
            pooled = (sum_ref[...], max_ref[...])                # (1, S) f32 each

            # W-direction validity masks depend only on the shift d; build once
            # and share across both pooled channels.
            wmask = {}
            for d in range(-PAD, PAD + 1):
                if d > 0:
                    wmask[d] = col < (W - d)
                elif d < 0:
                    wmask[d] = col >= (-d)

            def shifted_w(ci, d):
                # plane[h, w + d] in flat space == roll by -d, masked to the row.
                if d == 0:
                    return pooled[ci]
                r = pltpu.roll(pooled[ci], (-d) % S, axis=1)
                return jnp.where(wmask[d], r, 0.0)

            def shift_h(p, e):
                # plane[h + e, w] in flat space == roll by -e*W, masked to [0, H).
                if e == 0:
                    return p
                r = pltpu.roll(p, (-e * W) % S, axis=1)
                if e > 0:
                    return jnp.where(row < (H - e), r, 0.0)
                return jnp.where(row >= (-e), r, 0.0)

            acc = _accumulate_conv(w_ref, shifted_w, shift_h)
            o_ref[...] = jax.nn.sigmoid(acc)

    return kernel


def _make_2d_kernel(C, ct, H, W):
    """Pooling over (ct, H, W) tiles (W already lane-dense); conv on (H, W) planes."""
    ragged = (C % ct) != 0
    use_roll = (H % 8 == 0) and (W % 128 == 0)

    def kernel(w_ref, x_ref, o_ref, sum_ref, max_ref):
        c = pl.program_id(1)
        nprog = pl.num_programs(1)

        x = x_ref[...].astype(jnp.float32)                       # (ct, H, W)
        if ragged:
            ch = jax.lax.broadcasted_iota(jnp.int32, x.shape, 0) + c * ct
            valid = ch < C
            xs = jnp.where(valid, x, 0.0)
            xm = jnp.where(valid, x, -jnp.inf)
        else:
            xs, xm = x, x
        tile_sum = jnp.sum(xs, axis=0)                           # (H, W)
        tile_max = jnp.max(xm, axis=0)                           # (H, W)

        @pl.when(c == 0)
        def _():
            sum_ref[...] = tile_sum
            max_ref[...] = tile_max

        @pl.when(c > 0)
        def _():
            sum_ref[...] = sum_ref[...] + tile_sum
            max_ref[...] = jnp.maximum(max_ref[...], tile_max)

        @pl.when(c == nprog - 1)
        def _():
            pooled = (sum_ref[...], max_ref[...])                # (H, W) f32 each

            if use_roll:
                col = jax.lax.broadcasted_iota(jnp.int32, (H, W), 1)
                row = jax.lax.broadcasted_iota(jnp.int32, (H, W), 0)
                wmask = {}
                for d in range(-PAD, PAD + 1):
                    if d > 0:
                        wmask[d] = col < (W - d)
                    elif d < 0:
                        wmask[d] = col >= (-d)

                def shifted_w(ci, d):
                    if d == 0:
                        return pooled[ci]
                    r = pltpu.roll(pooled[ci], (-d) % W, axis=1)
                    return jnp.where(wmask[d], r, 0.0)

                def shift_h(p, e):
                    if e == 0:
                        return p
                    r = pltpu.roll(p, (-e) % H, axis=0)
                    if e > 0:
                        return jnp.where(row < (H - e), r, 0.0)
                    return jnp.where(row >= (-e), r, 0.0)
            else:
                # pad + static-slice fallback (H not a multiple of 8): padded
                # buffers are built once per pooled channel and reused.
                padded_w = [
                    jnp.zeros((H, W + 2 * PAD), jnp.float32)
                    .at[:, PAD:PAD + W].set(pooled[ci])
                    for ci in range(2)
                ]

                def shifted_w(ci, d):
                    return padded_w[ci][:, PAD + d:PAD + d + W]

                def shift_h(p, e):
                    if e == 0:
                        return p
                    padded = (jnp.zeros((H + 2 * PAD, W), jnp.float32)
                              .at[PAD:PAD + H, :].set(p))
                    return padded[PAD + e:PAD + e + H, :]

            acc = _accumulate_conv(w_ref, shifted_w, shift_h)
            o_ref[...] = jax.nn.sigmoid(acc)

    return kernel


def spatial_attention(x, conv_weight, channel_tile=None):
    """x: (B, C, H, W) f32/bf16; conv_weight: (1, 2, 7, 7).  Returns (B, 1, H, W) f32."""
    # TODO(synk): a v7x two-TensorCore path for B == 1 (halo-overlapping H slabs)
    # is omitted: a wrapper-level slab copy would ~3x the HBM traffic of this
    # HBM-bound kernel; doing it properly needs element-offset (halo) input
    # windows or manual in-kernel DMA.
    # TODO(synk): for very large H*W the conv epilogue should be tiled over H
    # with a 3-row halo; currently its temporaries are only reserved for in the
    # VMEM budget, not tiled.
    B, C, H, W = x.shape
    S = H * W

    # Fold the 1/C of the channel mean into the avg-channel taps so the kernel
    # only keeps a running channel sum.
    w = conv_weight.astype(jnp.float32).reshape(1, 2, KSIZE, KSIZE)
    w = w.at[0, 0].multiply(1.0 / C)
    w_flat = w.reshape(-1)                                       # (98,)

    budget = _vmem_budget_bytes()
    ct = channel_tile if channel_tile is not None else _channel_tile(
        C, S, x.dtype.itemsize, budget)
    ct = min(ct, C)
    nc = (C + ct - 1) // ct

    compiler_params = pltpu.CompilerParams(
        # batch: shard across TensorCores; channel: carries the sum/max scratch.
        dimension_semantics=("parallel", "arbitrary"),
        vmem_limit_bytes=budget,
    )

    if W % 128 == 0:
        # Spatial planes are already lane-dense: keep the (ct, H, W) layout.
        return pl.pallas_call(
            _make_2d_kernel(C, ct, H, W),
            out_shape=jax.ShapeDtypeStruct((B, 1, H, W), jnp.float32),
            grid_spec=pltpu.PrefetchScalarGridSpec(
                num_scalar_prefetch=1,
                grid=(B, nc),
                in_specs=[
                    pl.BlockSpec((None, ct, H, W), lambda b, c, w_s: (b, c, 0, 0)),
                ],
                out_specs=pl.BlockSpec((None, None, H, W),
                                       lambda b, c, w_s: (b, 0, 0, 0)),
                scratch_shapes=[pltpu.VMEM((H, W), jnp.float32),
                                pltpu.VMEM((H, W), jnp.float32)],
            ),
            compiler_params=compiler_params,
        )(w_flat, x)

    # W % 128 != 0: stream x lane-dense as (B, C, H*W) (free reshape, same HBM
    # layout).  The conv runs in the same flattened space, so no in-kernel
    # reshape is needed and the output store is lane-dense too.
    x_flat = x.reshape(B, C, S)
    flat = jnp.arange(S, dtype=jnp.int32)
    col_idx = (flat % W).reshape(1, S)
    row_idx = (flat // W).reshape(1, S)

    out = pl.pallas_call(
        _make_flat_kernel(C, ct, H, W),
        out_shape=jax.ShapeDtypeStruct((B, 1, S), jnp.float32),
        grid_spec=pltpu.PrefetchScalarGridSpec(
            num_scalar_prefetch=1,
            grid=(B, nc),
            in_specs=[
                pl.BlockSpec((None, ct, S), lambda b, c, w_s: (b, c, 0)),
                pl.BlockSpec((1, S), lambda b, c, w_s: (0, 0)),  # col index (constant)
                pl.BlockSpec((1, S), lambda b, c, w_s: (0, 0)),  # row index (constant)
            ],
            out_specs=pl.BlockSpec((None, 1, S), lambda b, c, w_s: (b, 0, 0)),
            scratch_shapes=[pltpu.VMEM((1, S), jnp.float32),
                            pltpu.VMEM((1, S), jnp.float32)],
        ),
        compiler_params=compiler_params,
    )(w_flat, x_flat, col_idx, row_idx)
    return out.reshape(B, 1, H, W)


def _reference(x, conv_weight):
    x = x.astype(jnp.float32)
    avg = jnp.mean(x, axis=1, keepdims=True)
    mx = jnp.max(x, axis=1, keepdims=True)
    combined = jnp.concatenate([avg, mx], axis=1)                # (B, 2, H, W)
    out = jax.lax.conv_general_dilated(
        combined, conv_weight.astype(jnp.float32),
        window_strides=(1, 1), padding=((PAD, PAD), (PAD, PAD)),
        dimension_numbers=("NCHW", "OIHW", "NCHW"))
    return jax.nn.sigmoid(out)


def _check(name, out, ref, tol):
    assert out.shape == ref.shape, (name, out.shape, ref.shape)
    err = float(jnp.max(jnp.abs(out - ref)))
    assert jnp.allclose(out, ref, atol=tol, rtol=tol), (name, err)


if __name__ == "__main__":
    key = jax.random.PRNGKey(0)
    kx, kw = jax.random.split(key)
    conv_weight = 0.1 * jax.random.normal(kw, (1, 2, KSIZE, KSIZE), dtype=jnp.float32)

    # 1) Module-spec shape (B, C, H, W) = (2, 4, 16, 16): lane-dense flat path.
    x = jax.random.normal(kx, (2, 4, 16, 16), dtype=jnp.float32)
    out = jax.block_until_ready(spatial_attention(x, conv_weight))
    _check("16x16 f32", out, _reference(x, conv_weight), 2e-5)

    # 2) bf16 input (halves HBM read traffic; accumulation stays f32 in-kernel).
    x_bf16 = x.astype(jnp.bfloat16)
    out_bf16 = jax.block_until_ready(spatial_attention(x_bf16, conv_weight))
    _check("16x16 bf16", out_bf16, _reference(x_bf16, conv_weight), 2e-3)

    # 3) Lane-aligned spatial width (W = 128): 2-D roll path.
    x3 = jax.random.normal(jax.random.PRNGKey(1), (2, 4, 16, 128), dtype=jnp.float32)
    out3 = jax.block_until_ready(spatial_attention(x3, conv_weight))
    _check("16x128 f32", out3, _reference(x3, conv_weight), 2e-5)

    # 4) Ragged channel count with a forced small channel tile: exercises the
    #    cdiv grid + masked partial last tile (sum -> 0, max -> -inf).
    x4 = jax.random.normal(jax.random.PRNGKey(2), (2, 20, 16, 16), dtype=jnp.float32)
    out4 = jax.block_until_ready(spatial_attention(x4, conv_weight, channel_tile=8))
    _check("ragged C=20 ct=8", out4, _reference(x4, conv_weight), 2e-5)

    print("KERNEL_OK")
</pallas_src>

<mosaic_0001>
module attributes {stable_mosaic.version = 11 : i64} {
  func.func @kernel(%arg0: i32, %arg1: i32, %arg2: memref<98xf32, #tpu.memory_space<smem>>, %arg3: memref<1x4x256xf32, #tpu.memory_space<vmem>>, %arg4: memref<1x256xi32, #tpu.memory_space<vmem>>, %arg5: memref<1x256xi32, #tpu.memory_space<vmem>>, %arg6: memref<1x1x256xf32, #tpu.memory_space<vmem>>, %arg7: memref<1x256xf32, #tpu.memory_space<vmem>>, %arg8: memref<1x256xf32, #tpu.memory_space<vmem>>) attributes {dimension_semantics = [#tpu.dimension_semantics<parallel>, #tpu.dimension_semantics<arbitrary>], iteration_bounds = array<i64: 2, 1>, scalar_prefetch = 1 : i64, scratch_operands = 2 : i64, tpu.core_type = #tpu.core_type<tc>, window_params = [{transform_indices = @transform_0, window_bounds = array<i64: 1, 4, 256>}, {pipeline_mode = #tpu.pipeline_mode<synchronous>, transform_indices = @transform_1, window_bounds = array<i64: 1, 256>}, {pipeline_mode = #tpu.pipeline_mode<synchronous>, transform_indices = @transform_2, window_bounds = array<i64: 1, 256>}, {transform_indices = @transform_3, window_bounds = array<i64: 1, 1, 256>}]} {
    %c0 = arith.constant 0 : index
    %c0_0 = arith.constant 0 : index
    %c0_1 = arith.constant 0 : index
    %0 = vector.load %arg3[%c0, %c0_0, %c0_1] : memref<1x4x256xf32, #tpu.memory_space<vmem>>, vector<1x4x256xf32>
    %1 = vector.shape_cast %0 : vector<1x4x256xf32> to vector<4x256xf32>
    %cst = arith.constant dense<0.000000e+00> : vector<256xf32>
    %2 = vector.multi_reduction <add>, %1, %cst [0] : vector<4x256xf32> to vector<256xf32>
    %3 = vector.shape_cast %2 : vector<256xf32> to vector<1x256xf32>
    %cst_2 = arith.constant dense<0xFF800000> : vector<256xf32>
    %4 = vector.multi_reduction <maximumf>, %1, %cst_2 [0] : vector<4x256xf32> to vector<256xf32>
    %5 = vector.shape_cast %4 : vector<256xf32> to vector<1x256xf32>
    %c0_i32 = arith.constant 0 : i32
    %6 = arith.cmpi eq, %arg1, %c0_i32 : i32
    %7 = arith.extui %6 : i1 to i32
    %c0_i32_3 = arith.constant 0 : i32
    %8 = arith.cmpi ne, %7, %c0_i32_3 : i32
    scf.if %8 {
      %c0_8 = arith.constant 0 : index
      %c0_9 = arith.constant 0 : index
      %15 = vector.load %arg7[%c0_8, %c0_9] : memref<1x256xf32, #tpu.memory_space<vmem>>, vector<1x256xf32>
      tpu.vector_store %arg7[%c0_8, %c0_9], %3 {strides = array<i32>} : memref<1x256xf32, #tpu.memory_space<vmem>>, vector<1x256xf32>,
      %c0_10 = arith.constant 0 : index
      %c0_11 = arith.constant 0 : index
      %16 = vector.load %arg8[%c0_10, %c0_11] : memref<1x256xf32, #tpu.memory_space<vmem>>, vector<1x256xf32>
      tpu.vector_store %arg8[%c0_10, %c0_11], %5 {strides = array<i32>} : memref<1x256xf32, #tpu.memory_space<vmem>>, vector<1x256xf32>,
    } else {
    }
    %c0_i32_4 = arith.constant 0 : i32
    %9 = arith.cmpi sgt, %arg1, %c0_i32_4 : i32
    %10 = arith.extui %9 : i1 to i32
    %c0_i32_5 = arith.constant 0 : i32
    %11 = arith.cmpi ne, %10, %c0_i32_5 : i32
    scf.if %11 {
      %c0_8 = arith.constant 0 : index
      %c0_9 = arith.constant 0 : index
      %15 = vector.load %arg7[%c0_8, %c0_9] : memref<1x256xf32, #tpu.memory_space<vmem>>, vector<1x256xf32>
      %16 = arith.addf %15, %3 : vector<1x256xf32>
      %c0_10 = arith.constant 0 : index
      %c0_11 = arith.constant 0 : index
      %17 = vector.load %arg7[%c0_10, %c0_11] : memref<1x256xf32, #tpu.memory_space<vmem>>, vector<1x256xf32>
      tpu.vector_store %arg7[%c0_10, %c0_11], %16 {strides = array<i32>} : memref<1x256xf32, #tpu.memory_space<vmem>>, vector<1x256xf32>,
      %c0_12 = arith.constant 0 : index
      %c0_13 = arith.constant 0 : index
      %18 = vector.load %arg8[%c0_12, %c0_13] : memref<1x256xf32, #tpu.memory_space<vmem>>, vector<1x256xf32>
      %19 = arith.maximumf %18, %5 : vector<1x256xf32>
      %c0_14 = arith.constant 0 : index
      %c0_15 = arith.constant 0 : index
      %20 = vector.load %arg8[%c0_14, %c0_15] : memref<1x256xf32, #tpu.memory_space<vmem>>, vector<1x256xf32>
      tpu.vector_store %arg8[%c0_14, %c0_15], %19 {strides = array<i32>} : memref<1x256xf32, #tpu.memory_space<vmem>>, vector<1x256xf32>,
    } else {
    }
    %c0_i32_6 = arith.constant 0 : i32
    %12 = arith.cmpi eq, %arg1, %c0_i32_6 : i32
    %13 = arith.extui %12 : i1 to i32
    %c0_i32_7 = arith.constant 0 : i32
    %14 = arith.cmpi ne, %13, %c0_i32_7 : i32
    scf.if %14 {
      %c0_8 = arith.constant 0 : index
      %c0_9 = arith.constant 0 : index
      %15 = vector.load %arg4[%c0_8, %c0_9] : memref<1x256xi32, #tpu.memory_space<vmem>>, vector<1x256xi32>
      %c0_10 = arith.constant 0 : index
      %c0_11 = arith.constant 0 : index
      %16 = vector.load %arg5[%c0_10, %c0_11] : memref<1x256xi32, #tpu.memory_space<vmem>>, vector<1x256xi32>
      %c0_12 = arith.constant 0 : index
      %c0_13 = arith.constant 0 : index
      %17 = vector.load %arg7[%c0_12, %c0_13] : memref<1x256xf32, #tpu.memory_space<vmem>>, vector<1x256xf32>
      %c0_14 = arith.constant 0 : index
      %c0_15 = arith.constant 0 : index
      %18 = vector.load %arg8[%c0_14, %c0_15] : memref<1x256xf32, #tpu.memory_space<vmem>>, vector<1x256xf32>
      %c3_i32 = arith.constant 3 : i32
      %19 = vector.broadcast %c3_i32 : i32 to vector<1x256xi32>
      %20 = arith.cmpi sge, %15, %19 : vector<1x256xi32>
      %c2_i32 = arith.constant 2 : i32
      %21 = vector.broadcast %c2_i32 : i32 to vector<1x256xi32>
      %22 = arith.cmpi sge, %15, %21 : vector<1x256xi32>
      %c1_i32 = arith.constant 1 : i32
      %23 = vector.broadcast %c1_i32 : i32 to vector<1x256xi32>
      %24 = arith.cmpi sge, %15, %23 : vector<1x256xi32>
      %c15_i32 = arith.constant 15 : i32
      %25 = vector.broadcast %c15_i32 : i32 to vector<1x256xi32>
      %26 = arith.cmpi slt, %15, %25 : vector<1x256xi32>
      %c14_i32 = arith.constant 14 : i32
      %27 = vector.broadcast %c14_i32 : i32 to vector<1x256xi32>
      %28 = arith.cmpi slt, %15, %27 : vector<1x256xi32>
      %c13_i32 = arith.constant 13 : i32
      %29 = vector.broadcast %c13_i32 : i32 to vector<1x256xi32>
      %30 = arith.cmpi slt, %15, %29 : vector<1x256xi32>
      %c3_i32_16 = arith.constant 3 : i32
      %31 = tpu.dynamic_rotate %17 by %c3_i32_16 dim 1 : vector<1x256xf32>, i32 -> vector<1x256xf32>
      %cst_17 = arith.constant 0.000000e+00 : f32
      %32 = vector.broadcast %cst_17 : f32 to vector<1x256xf32>
      %33 = arith.select %20, %31, %32 : vector<1x256xi1>, vector<1x256xf32>
      %c0_18 = arith.constant 0 : index
      %34 = memref.load %arg2[%c0_18] : memref<98xf32, #tpu.memory_space<smem>>
      %35 = vector.broadcast %34 : f32 to vector<1x256xf32>
      %36 = arith.mulf %35, %33 : vector<1x256xf32>
      %c7 = arith.constant 7 : index
      %37 = memref.load %arg2[%c7] : memref<98xf32, #tpu.memory_space<smem>>
      %38 = vector.broadcast %37 : f32 to vector<1x256xf32>
      %39 = arith.mulf %38, %33 : vector<1x256xf32>
      %c14 = arith.constant 14 : index
      %40 = memref.load %arg2[%c14] : memref<98xf32, #tpu.memory_space<smem>>
      %41 = vector.broadcast %40 : f32 to vector<1x256xf32>
      %42 = arith.mulf %41, %33 : vector<1x256xf32>
      %c21 = arith.constant 21 : index
      %43 = memref.load %arg2[%c21] : memref<98xf32, #tpu.memory_space<smem>>
      %44 = vector.broadcast %43 : f32 to vector<1x256xf32>
      %45 = arith.mulf %44, %33 : vector<1x256xf32>
      %c28 = arith.constant 28 : index
      %46 = memref.load %arg2[%c28] : memref<98xf32, #tpu.memory_space<smem>>
      %47 = vector.broadcast %46 : f32 to vector<1x256xf32>
      %48 = arith.mulf %47, %33 : vector<1x256xf32>
      %c35 = arith.constant 35 : index
      %49 = memref.load %arg2[%c35] : memref<98xf32, #tpu.memory_space<smem>>
      %50 = vector.broadcast %49 : f32 to vector<1x256xf32>
      %51 = arith.mulf %50, %33 : vector<1x256xf32>
      %c42 = arith.constant 42 : index
      %52 = memref.load %arg2[%c42] : memref<98xf32, #tpu.memory_space<smem>>
      %53 = vector.broadcast %52 : f32 to vector<1x256xf32>
      %54 = arith.mulf %53, %33 : vector<1x256xf32>
      %c2_i32_19 = arith.constant 2 : i32
      %55 = tpu.dynamic_rotate %17 by %c2_i32_19 dim 1 : vector<1x256xf32>, i32 -> vector<1x256xf32>
      %cst_20 = arith.constant 0.000000e+00 : f32
      %56 = vector.broadcast %cst_20 : f32 to vector<1x256xf32>
      %57 = arith.select %22, %55, %56 : vector<1x256xi1>, vector<1x256xf32>
      %c1 = arith.constant 1 : index
      %58 = memref.load %arg2[%c1] : memref<98xf32, #tpu.memory_space<smem>>
      %59 = vector.broadcast %58 : f32 to vector<1x256xf32>
      %60 = arith.mulf %59, %57 : vector<1x256xf32>
      %61 = arith.addf %36, %60 : vector<1x256xf32>
      %c8 = arith.constant 8 : index
      %62 = memref.load %arg2[%c8] : memref<98xf32, #tpu.memory_space<smem>>
      %63 = vector.broadcast %62 : f32 to vector<1x256xf32>
      %64 = arith.mulf %63, %57 : vector<1x256xf32>
      %65 = arith.addf %39, %64 : vector<1x256xf32>
      %c15 = arith.constant 15 : index
      %66 = memref.load %arg2[%c15] : memref<98xf32, #tpu.memory_space<smem>>
      %67 = vector.broadcast %66 : f32 to vector<1x256xf32>
      %68 = arith.mulf %67, %57 : vector<1x256xf32>
      %69 = arith.addf %42, %68 : vector<1x256xf32>
      %c22 = arith.constant 22 : index
      %70 = memref.load %arg2[%c22] : memref<98xf32, #tpu.memory_space<smem>>
      %71 = vector.broadcast %70 : f32 to vector<1x256xf32>
      %72 = arith.mulf %71, %57 : vector<1x256xf32>
      %73 = arith.addf %45, %72 : vector<1x256xf32>
      %c29 = arith.constant 29 : index
      %74 = memref.load %arg2[%c29] : memref<98xf32, #tpu.memory_space<smem>>
      %75 = vector.broadcast %74 : f32 to vector<1x256xf32>
      %76 = arith.mulf %75, %57 : vector<1x256xf32>
      %77 = arith.addf %48, %76 : vector<1x256xf32>
      %c36 = arith.constant 36 : index
      %78 = memref.load %arg2[%c36] : memref<98xf32, #tpu.memory_space<smem>>
      %79 = vector.broadcast %78 : f32 to vector<1x256xf32>
      %80 = arith.mulf %79, %57 : vector<1x256xf32>
      %81 = arith.addf %51, %80 : vector<1x256xf32>
      %c43 = arith.constant 43 : index
      %82 = memref.load %arg2[%c43] : memref<98xf32, #tpu.memory_space<smem>>
      %83 = vector.broadcast %82 : f32 to vector<1x256xf32>
      %84 = arith.mulf %83, %57 : vector<1x256xf32>
      %85 = arith.addf %54, %84 : vector<1x256xf32>
      %c1_i32_21 = arith.constant 1 : i32
      %86 = tpu.dynamic_rotate %17 by %c1_i32_21 dim 1 : vector<1x256xf32>, i32 -> vector<1x256xf32>
      %cst_22 = arith.constant 0.000000e+00 : f32
      %87 = vector.broadcast %cst_22 : f32 to vector<1x256xf32>
      %88 = arith.select %24, %86, %87 : vector<1x256xi1>, vector<1x256xf32>
      %c2 = arith.constant 2 : index
      %89 = memref.load %arg2[%c2] : memref<98xf32, #tpu.memory_space<smem>>
      %90 = vector.broadcast %89 : f32 to vector<1x256xf32>
      %91 = arith.mulf %90, %88 : vector<1x256xf32>
      %92 = arith.addf %61, %91 : vector<1x256xf32>
      %c9 = arith.constant 9 : index
      %93 = memref.load %arg2[%c9] : memref<98xf32, #tpu.memory_space<smem>>
      %94 = vector.broadcast %93 : f32 to vector<1x256xf32>
      %95 = arith.mulf %94, %88 : vector<1x256xf32>
      %96 = arith.addf %65, %95 : vector<1x256xf32>
      %c16 = arith.constant 16 : index
      %97 = memref.load %arg2[%c16] : memref<98xf32, #tpu.memory_space<smem>>
      %98 = vector.broadcast %97 : f32 to vector<1x256xf32>
      %99 = arith.mulf %98, %88 : vector<1x256xf32>
      %100 = arith.addf %69, %99 : vector<1x256xf32>
      %c23 = arith.constant 23 : index
      %101 = memref.load %arg2[%c23] : memref<98xf32, #tpu.memory_space<smem>>
      %102 = vector.broadcast %101 : f32 to vector<1x256xf32>
      %103 = arith.mulf %102, %88 : vector<1x256xf32>
      %104 = arith.addf %73, %103 : vector<1x256xf32>
      %c30 = arith.constant 30 : index
      %105 = memref.load %arg2[%c30] : memref<98xf32, #tpu.memory_space<smem>>
      %106 = vector.broadcast %105 : f32 to vector<1x256xf32>
      %107 = arith.mulf %106, %88 : vector<1x256xf32>
      %108 = arith.addf %77, %107 : vector<1x256xf32>
      %c37 = arith.constant 37 : index
      %109 = memref.load %arg2[%c37] : memref<98xf32, #tpu.memory_space<smem>>
      %110 = vector.broadcast %109 : f32 to vector<1x256xf32>
      %111 = arith.mulf %110, %88 : vector<1x256xf32>
      %112 = arith.addf %81, %111 : vector<1x256xf32>
      %c44 = arith.constant 44 : index
      %113 = memref.load %arg2[%c44] : memref<98xf32, #tpu.memory_space<smem>>
      %114 = vector.broadcast %113 : f32 to vector<1x256xf32>
      %115 = arith.mulf %114, %88 : vector<1x256xf32>
      %116 = arith.addf %85, %115 : vector<1x256xf32>
      %c3 = arith.constant 3 : index
      %117 = memref.load %arg2[%c3] : memref<98xf32, #tpu.memory_space<smem>>
      %118 = vector.broadcast %117 : f32 to vector<1x256xf32>
      %119 = arith.mulf %118, %17 : vector<1x256xf32>
      %120 = arith.addf %92, %119 : vector<1x256xf32>
      %c10 = arith.constant 10 : index
      %121 = memref.load %arg2[%c10] : memref<98xf32, #tpu.memory_space<smem>>
      %122 = vector.broadcast %121 : f32 to vector<1x256xf32>
      %123 = arith.mulf %122, %17 : vector<1x256xf32>
      %124 = arith.addf %96, %123 : vector<1x256xf32>
      %c17 = arith.constant 17 : index
      %125 = memref.load %arg2[%c17] : memref<98xf32, #tpu.memory_space<smem>>
      %126 = vector.broadcast %125 : f32 to vector<1x256xf32>
      %127 = arith.mulf %126, %17 : vector<1x256xf32>
      %128 = arith.addf %100, %127 : vector<1x256xf32>
      %c24 = arith.constant 24 : index
      %129 = memref.load %arg2[%c24] : memref<98xf32, #tpu.memory_space<smem>>
      %130 = vector.broadcast %129 : f32 to vector<1x256xf32>
      %131 = arith.mulf %130, %17 : vector<1x256xf32>
      %132 = arith.addf %104, %131 : vector<1x256xf32>
      %c31 = arith.constant 31 : index
      %133 = memref.load %arg2[%c31] : memref<98xf32, #tpu.memory_space<smem>>
      %134 = vector.broadcast %133 : f32 to vector<1x256xf32>
      %135 = arith.mulf %134, %17 : vector<1x256xf32>
      %136 = arith.addf %108, %135 : vector<1x256xf32>
      %c38 = arith.constant 38 : index
      %137 = memref.load %arg2[%c38] : memref<98xf32, #tpu.memory_space<smem>>
      %138 = vector.broadcast %137 : f32 to vector<1x256xf32>
      %139 = arith.mulf %138, %17 : vector<1x256xf32>
      %140 = arith.addf %112, %139 : vector<1x256xf32>
      %c45 = arith.constant 45 : index
      %141 = memref.load %arg2[%c45] : memref<98xf32, #tpu.memory_space<smem>>
      %142 = vector.broadcast %141 : f32 to vector<1x256xf32>
      %143 = arith.mulf %142, %17 : vector<1x256xf32>
      %144 = arith.addf %116, %143 : vector<1x256xf32>
      %c255_i32 = arith.constant 255 : i32
      %145 = tpu.dynamic_rotate %17 by %c255_i32 dim 1 : vector<1x256xf32>, i32 -> vector<1x256xf32>
      %cst_23 = arith.constant 0.000000e+00 : f32
      %146 = vector.broadcast %cst_23 : f32 to vector<1x256xf32>
      %147 = arith.select %26, %145, %146 : vector<1x256xi1>, vector<1x256xf32>
      %c4 = arith.constant 4 : index
      %148 = memref.load %arg2[%c4] : memref<98xf32, #tpu.memory_space<smem>>
      %149 = vector.broadcast %148 : f32 to vector<1x256xf32>
      %150 = arith.mulf %149, %147 : vector<1x256xf32>
      %151 = arith.addf %120, %150 : vector<1x256xf32>
      %c11 = arith.constant 11 : index
      %152 = memref.load %arg2[%c11] : memref<98xf32, #tpu.memory_space<smem>>
      %153 = vector.broadcast %152 : f32 to vector<1x256xf32>
      %154 = arith.mulf %153, %147 : vector<1x256xf32>
      %155 = arith.addf %124, %154 : vector<1x256xf32>
      %c18 = arith.constant 18 : index
      %156 = memref.load %arg2[%c18] : memref<98xf32, #tpu.memory_space<smem>>
      %157 = vector.broadcast %156 : f32 to vector<1x256xf32>
      %158 = arith.mulf %157, %147 : vector<1x256xf32>
      %159 = arith.addf %128, %158 : vector<1x256xf32>
      %c25 = arith.constant 25 : index
      %160 = memref.load %arg2[%c25] : memref<98xf32, #tpu.memory_space<smem>>
      %161 = vector.broadcast %160 : f32 to vector<1x256xf32>
      %162 = arith.mulf %161, %147 : vector<1x256xf32>
      %163 = arith.addf %132, %162 : vector<1x256xf32>
      %c32 = arith.constant 32 : index
      %164 = memref.load %arg2[%c32] : memref<98xf32, #tpu.memory_space<smem>>
      %165 = vector.broadcast %164 : f32 to vector<1x256xf32>
      %166 = arith.mulf %165, %147 : vector<1x256xf32>
      %167 = arith.addf %136, %166 : vector<1x256xf32>
      %c39 = arith.constant 39 : index
      %168 = memref.load %arg2[%c39] : memref<98xf32, #tpu.memory_space<smem>>
      %169 = vector.broadcast %168 : f32 to vector<1x256xf32>
      %170 = arith.mulf %169, %147 : vector<1x256xf32>
      %171 = arith.addf %140, %170 : vector<1x256xf32>
      %c46 = arith.constant 46 : index
      %172 = memref.load %arg2[%c46] : memref<98xf32, #tpu.memory_space<smem>>
      %173 = vector.broadcast %172 : f32 to vector<1x256xf32>
      %174 = arith.mulf %173, %147 : vector<1x256xf32>
      %175 = arith.addf %144, %174 : vector<1x256xf32>
      %c254_i32 = arith.constant 254 : i32
      %176 = tpu.dynamic_rotate %17 by %c254_i32 dim 1 : vector<1x256xf32>, i32 -> vector<1x256xf32>
      %cst_24 = arith.constant 0.000000e+00 : f32
      %177 = vector.broadcast %cst_24 : f32 to vector<1x256xf32>
      %178 = arith.select %28, %176, %177 : vector<1x256xi1>, vector<1x256xf32>
      %c5 = arith.constant 5 : index
      %179 = memref.load %arg2[%c5] : memref<98xf32, #tpu.memory_space<smem>>
      %180 = vector.broadcast %179 : f32 to vector<1x256xf32>
      %181 = arith.mulf %180, %178 : vector<1x256xf32>
      %182 = arith.addf %151, %181 : vector<1x256xf32>
      %c12 = arith.constant 12 : index
      %183 = memref.load %arg2[%c12] : memref<98xf32, #tpu.memory_space<smem>>
      %184 = vector.broadcast %183 : f32 to vector<1x256xf32>
      %185 = arith.mulf %184, %178 : vector<1x256xf32>
      %186 = arith.addf %155, %185 : vector<1x256xf32>
      %c19 = arith.constant 19 : index
      %187 = memref.load %arg2[%c19] : memref<98xf32, #tpu.memory_space<smem>>
      %188 = vector.broadcast %187 : f32 to vector<1x256xf32>
      %189 = arith.mulf %188, %178 : vector<1x256xf32>
      %190 = arith.addf %159, %189 : vector<1x256xf32>
      %c26 = arith.constant 26 : index
      %191 = memref.load %arg2[%c26] : memref<98xf32, #tpu.memory_space<smem>>
      %192 = vector.broadcast %191 : f32 to vector<1x256xf32>
      %193 = arith.mulf %192, %178 : vector<1x256xf32>
      %194 = arith.addf %163, %193 : vector<1x256xf32>
      %c33 = arith.constant 33 : index
      %195 = memref.load %arg2[%c33] : memref<98xf32, #tpu.memory_space<smem>>
      %196 = vector.broadcast %195 : f32 to vector<1x256xf32>
      %197 = arith.mulf %196, %178 : vector<1x256xf32>
      %198 = arith.addf %167, %197 : vector<1x256xf32>
      %c40 = arith.constant 40 : index
      %199 = memref.load %arg2[%c40] : memref<98xf32, #tpu.memory_space<smem>>
      %200 = vector.broadcast %199 : f32 to vector<1x256xf32>
      %201 = arith.mulf %200, %178 : vector<1x256xf32>
      %202 = arith.addf %171, %201 : vector<1x256xf32>
      %c47 = arith.constant 47 : index
      %203 = memref.load %arg2[%c47] : memref<98xf32, #tpu.memory_space<smem>>
      %204 = vector.broadcast %203 : f32 to vector<1x256xf32>
      %205 = arith.mulf %204, %178 : vector<1x256xf32>
      %206 = arith.addf %175, %205 : vector<1x256xf32>
      %c253_i32 = arith.constant 253 : i32
      %207 = tpu.dynamic_rotate %17 by %c253_i32 dim 1 : vector<1x256xf32>, i32 -> vector<1x256xf32>
      %cst_25 = arith.constant 0.000000e+00 : f32
      %208 = vector.broadcast %cst_25 : f32 to vector<1x256xf32>
      %209 = arith.select %30, %207, %208 : vector<1x256xi1>, vector<1x256xf32>
      %c6 = arith.constant 6 : index
      %210 = memref.load %arg2[%c6] : memref<98xf32, #tpu.memory_space<smem>>
      %211 = vector.broadcast %210 : f32 to vector<1x256xf32>
      %212 = arith.mulf %211, %209 : vector<1x256xf32>
      %213 = arith.addf %182, %212 : vector<1x256xf32>
      %c13 = arith.constant 13 : index
      %214 = memref.load %arg2[%c13] : memref<98xf32, #tpu.memory_space<smem>>
      %215 = vector.broadcast %214 : f32 to vector<1x256xf32>
      %216 = arith.mulf %215, %209 : vector<1x256xf32>
      %217 = arith.addf %186, %216 : vector<1x256xf32>
      %c20 = arith.constant 20 : index
      %218 = memref.load %arg2[%c20] : memref<98xf32, #tpu.memory_space<smem>>
      %219 = vector.broadcast %218 : f32 to vector<1x256xf32>
      %220 = arith.mulf %219, %209 : vector<1x256xf32>
      %221 = arith.addf %190, %220 : vector<1x256xf32>
      %c27 = arith.constant 27 : index
      %222 = memref.load %arg2[%c27] : memref<98xf32, #tpu.memory_space<smem>>
      %223 = vector.broadcast %222 : f32 to vector<1x256xf32>
      %224 = arith.mulf %223, %209 : vector<1x256xf32>
      %225 = arith.addf %194, %224 : vector<1x256xf32>
      %c34 = arith.constant 34 : index
      %226 = memref.load %arg2[%c34] : memref<98xf32, #tpu.memory_space<smem>>
      %227 = vector.broadcast %226 : f32 to vector<1x256xf32>
      %228 = arith.mulf %227, %209 : vector<1x256xf32>
      %229 = arith.addf %198, %228 : vector<1x256xf32>
      %c41 = arith.constant 41 : index
      %230 = memref.load %arg2[%c41] : memref<98xf32, #tpu.memory_space<smem>>
      %231 = vector.broadcast %230 : f32 to vector<1x256xf32>
      %232 = arith.mulf %231, %209 : vector<1x256xf32>
      %233 = arith.addf %202, %232 : vector<1x256xf32>
      %c48 = arith.constant 48 : index
      %234 = memref.load %arg2[%c48] : memref<98xf32, #tpu.memory_space<smem>>
      %235 = vector.broadcast %234 : f32 to vector<1x256xf32>
      %236 = arith.mulf %235, %209 : vector<1x256xf32>
      %237 = arith.addf %206, %236 : vector<1x256xf32>
      %c3_i32_26 = arith.constant 3 : i32
      %238 = tpu.dynamic_rotate %18 by %c3_i32_26 dim 1 : vector<1x256xf32>, i32 -> vector<1x256xf32>
      %cst_27 = arith.constant 0.000000e+00 : f32
      %239 = vector.broadcast %cst_27 : f32 to vector<1x256xf32>
      %240 = arith.select %20, %238, %239 : vector<1x256xi1>, vector<1x256xf32>
      %c49 = arith.constant 49 : index
      %241 = memref.load %arg2[%c49] : memref<98xf32, #tpu.memory_space<smem>>
      %242 = vector.broadcast %241 : f32 to vector<1x256xf32>
      %243 = arith.mulf %242, %240 : vector<1x256xf32>
      %244 = arith.addf %213, %243 : vector<1x256xf32>
      %c56 = arith.constant 56 : index
      %245 = memref.load %arg2[%c56] : memref<98xf32, #tpu.memory_space<smem>>
      %246 = vector.broadcast %245 : f32 to vector<1x256xf32>
      %247 = arith.mulf %246, %240 : vector<1x256xf32>
      %248 = arith.addf %217, %247 : vector<1x256xf32>
      %c63 = arith.constant 63 : index
      %249 = memref.load %arg2[%c63] : memref<98xf32, #tpu.memory_space<smem>>
      %250 = vector.broadcast %249 : f32 to vector<1x256xf32>
      %251 = arith.mulf %250, %240 : vector<1x256xf32>
      %252 = arith.addf %221, %251 : vector<1x256xf32>
      %c70 = arith.constant 70 : index
      %253 = memref.load %arg2[%c70] : memref<98xf32, #tpu.memory_space<smem>>
      %254 = vector.broadcast %253 : f32 to vector<1x256xf32>
      %255 = arith.mulf %254, %240 : vector<1x256xf32>
      %256 = arith.addf %225, %255 : vector<1x256xf32>
      %c77 = arith.constant 77 : index
      %257 = memref.load %arg2[%c77] : memref<98xf32, #tpu.memory_space<smem>>
      %258 = vector.broadcast %257 : f32 to vector<1x256xf32>
      %259 = arith.mulf %258, %240 : vector<1x256xf32>
      %260 = arith.addf %229, %259 : vector<1x256xf32>
      %c84 = arith.constant 84 : index
      %261 = memref.load %arg2[%c84] : memref<98xf32, #tpu.memory_space<smem>>
      %262 = vector.broadcast %261 : f32 to vector<1x256xf32>
      %263 = arith.mulf %262, %240 : vector<1x256xf32>
      %264 = arith.addf %233, %263 : vector<1x256xf32>
      %c91 = arith.constant 91 : index
      %265 = memref.load %arg2[%c91] : memref<98xf32, #tpu.memory_space<smem>>
      %266 = vector.broadcast %265 : f32 to vector<1x256xf32>
      %267 = arith.mulf %266, %240 : vector<1x256xf32>
      %268 = arith.addf %237, %267 : vector<1x256xf32>
      %c2_i32_28 = arith.constant 2 : i32
      %269 = tpu.dynamic_rotate %18 by %c2_i32_28 dim 1 : vector<1x256xf32>, i32 -> vector<1x256xf32>
      %cst_29 = arith.constant 0.000000e+00 : f32
      %270 = vector.broadcast %cst_29 : f32 to vector<1x256xf32>
      %271 = arith.select %22, %269, %270 : vector<1x256xi1>, vector<1x256xf32>
      %c50 = arith.constant 50 : index
      %272 = memref.load %arg2[%c50] : memref<98xf32, #tpu.memory_space<smem>>
      %273 = vector.broadcast %272 : f32 to vector<1x256xf32>
      %274 = arith.mulf %273, %271 : vector<1x256xf32>
      %275 = arith.addf %244, %274 : vector<1x256xf32>
      %c57 = arith.constant 57 : index
      %276 = memref.load %arg2[%c57] : memref<98xf32, #tpu.memory_space<smem>>
      %277 = vector.broadcast %276 : f32 to vector<1x256xf32>
      %278 = arith.mulf %277, %271 : vector<1x256xf32>
      %279 = arith.addf %248, %278 : vector<1x256xf32>
      %c64 = arith.constant 64 : index
      %280 = memref.load %arg2[%c64] : memref<98xf32, #tpu.memory_space<smem>>
      %281 = vector.broadcast %280 : f32 to vector<1x256xf32>
      %282 = arith.mulf %281, %271 : vector<1x256xf32>
      %283 = arith.addf %252, %282 : vector<1x256xf32>
      %c71 = arith.constant 71 : index
      %284 = memref.load %arg2[%c71] : memref<98xf32, #tpu.memory_space<smem>>
      %285 = vector.broadcast %284 : f32 to vector<1x256xf32>
      %286 = arith.mulf %285, %271 : vector<1x256xf32>
      %287 = arith.addf %256, %286 : vector<1x256xf32>
      %c78 = arith.constant 78 : index
      %288 = memref.load %arg2[%c78] : memref<98xf32, #tpu.memory_space<smem>>
      %289 = vector.broadcast %288 : f32 to vector<1x256xf32>
      %290 = arith.mulf %289, %271 : vector<1x256xf32>
      %291 = arith.addf %260, %290 : vector<1x256xf32>
      %c85 = arith.constant 85 : index
      %292 = memref.load %arg2[%c85] : memref<98xf32, #tpu.memory_space<smem>>
      %293 = vector.broadcast %292 : f32 to vector<1x256xf32>
      %294 = arith.mulf %293, %271 : vector<1x256xf32>
      %295 = arith.addf %264, %294 : vector<1x256xf32>
      %c92 = arith.constant 92 : index
      %296 = memref.load %arg2[%c92] : memref<98xf32, #tpu.memory_space<smem>>
      %297 = vector.broadcast %296 : f32 to vector<1x256xf32>
      %298 = arith.mulf %297, %271 : vector<1x256xf32>
      %299 = arith.addf %268, %298 : vector<1x256xf32>
      %c1_i32_30 = arith.constant 1 : i32
      %300 = tpu.dynamic_rotate %18 by %c1_i32_30 dim 1 : vector<1x256xf32>, i32 -> vector<1x256xf32>
      %cst_31 = arith.constant 0.000000e+00 : f32
      %301 = vector.broadcast %cst_31 : f32 to vector<1x256xf32>
      %302 = arith.select %24, %300, %301 : vector<1x256xi1>, vector<1x256xf32>
      %c51 = arith.constant 51 : index
      %303 = memref.load %arg2[%c51] : memref<98xf32, #tpu.memory_space<smem>>
      %304 = vector.broadcast %303 : f32 to vector<1x256xf32>
      %305 = arith.mulf %304, %302 : vector<1x256xf32>
      %306 = arith.addf %275, %305 : vector<1x256xf32>
      %c58 = arith.constant 58 : index
      %307 = memref.load %arg2[%c58] : memref<98xf32, #tpu.memory_space<smem>>
      %308 = vector.broadcast %307 : f32 to vector<1x256xf32>
      %309 = arith.mulf %308, %302 : vector<1x256xf32>
      %310 = arith.addf %279, %309 : vector<1x256xf32>
      %c65 = arith.constant 65 : index
      %311 = memref.load %arg2[%c65] : memref<98xf32, #tpu.memory_space<smem>>
      %312 = vector.broadcast %311 : f32 to vector<1x256xf32>
      %313 = arith.mulf %312, %302 : vector<1x256xf32>
      %314 = arith.addf %283, %313 : vector<1x256xf32>
      %c72 = arith.constant 72 : index
      %315 = memref.load %arg2[%c72] : memref<98xf32, #tpu.memory_space<smem>>
      %316 = vector.broadcast %315 : f32 to vector<1x256xf32>
      %317 = arith.mulf %316, %302 : vector<1x256xf32>
      %318 = arith.addf %287, %317 : vector<1x256xf32>
      %c79 = arith.constant 79 : index
      %319 = memref.load %arg2[%c79] : memref<98xf32, #tpu.memory_space<smem>>
      %320 = vector.broadcast %319 : f32 to vector<1x256xf32>
      %321 = arith.mulf %320, %302 : vector<1x256xf32>
      %322 = arith.addf %291, %321 : vector<1x256xf32>
      %c86 = arith.constant 86 : index
      %323 = memref.load %arg2[%c86] : memref<98xf32, #tpu.memory_space<smem>>
      %324 = vector.broadcast %323 : f32 to vector<1x256xf32>
      %325 = arith.mulf %324, %302 : vector<1x256xf32>
      %326 = arith.addf %295, %325 : vector<1x256xf32>
      %c93 = arith.constant 93 : index
      %327 = memref.load %arg2[%c93] : memref<98xf32, #tpu.memory_space<smem>>
      %328 = vector.broadcast %327 : f32 to vector<1x256xf32>
      %329 = arith.mulf %328, %302 : vector<1x256xf32>
      %330 = arith.addf %299, %329 : vector<1x256xf32>
      %c52 = arith.constant 52 : index
      %331 = memref.load %arg2[%c52] : memref<98xf32, #tpu.memory_space<smem>>
      %332 = vector.broadcast %331 : f32 to vector<1x256xf32>
      %333 = arith.mulf %332, %18 : vector<1x256xf32>
      %334 = arith.addf %306, %333 : vector<1x256xf32>
      %c59 = arith.constant 59 : index
      %335 = memref.load %arg2[%c59] : memref<98xf32, #tpu.memory_space<smem>>
      %336 = vector.broadcast %335 : f32 to vector<1x256xf32>
      %337 = arith.mulf %336, %18 : vector<1x256xf32>
      %338 = arith.addf %310, %337 : vector<1x256xf32>
      %c66 = arith.constant 66 : index
      %339 = memref.load %arg2[%c66] : memref<98xf32, #tpu.memory_space<smem>>
      %340 = vector.broadcast %339 : f32 to vector<1x256xf32>
      %341 = arith.mulf %340, %18 : vector<1x256xf32>
      %342 = arith.addf %314, %341 : vector<1x256xf32>
      %c73 = arith.constant 73 : index
      %343 = memref.load %arg2[%c73] : memref<98xf32, #tpu.memory_space<smem>>
      %344 = vector.broadcast %343 : f32 to vector<1x256xf32>
      %345 = arith.mulf %344, %18 : vector<1x256xf32>
      %346 = arith.addf %318, %345 : vector<1x256xf32>
      %c80 = arith.constant 80 : index
      %347 = memref.load %arg2[%c80] : memref<98xf32, #tpu.memory_space<smem>>
      %348 = vector.broadcast %347 : f32 to vector<1x256xf32>
      %349 = arith.mulf %348, %18 : vector<1x256xf32>
      %350 = arith.addf %322, %349 : vector<1x256xf32>
      %c87 = arith.constant 87 : index
      %351 = memref.load %arg2[%c87] : memref<98xf32, #tpu.memory_space<smem>>
      %352 = vector.broadcast %351 : f32 to vector<1x256xf32>
      %353 = arith.mulf %352, %18 : vector<1x256xf32>
      %354 = arith.addf %326, %353 : vector<1x256xf32>
      %c94 = arith.constant 94 : index
      %355 = memref.load %arg2[%c94] : memref<98xf32, #tpu.memory_space<smem>>
      %356 = vector.broadcast %355 : f32 to vector<1x256xf32>
      %357 = arith.mulf %356, %18 : vector<1x256xf32>
      %358 = arith.addf %330, %357 : vector<1x256xf32>
      %c255_i32_32 = arith.constant 255 : i32
      %359 = tpu.dynamic_rotate %18 by %c255_i32_32 dim 1 : vector<1x256xf32>, i32 -> vector<1x256xf32>
      %cst_33 = arith.constant 0.000000e+00 : f32
      %360 = vector.broadcast %cst_33 : f32 to vector<1x256xf32>
      %361 = arith.select %26, %359, %360 : vector<1x256xi1>, vector<1x256xf32>
      %c53 = arith.constant 53 : index
      %362 = memref.load %arg2[%c53] : memref<98xf32, #tpu.memory_space<smem>>
      %363 = vector.broadcast %362 : f32 to vector<1x256xf32>
      %364 = arith.mulf %363, %361 : vector<1x256xf32>
      %365 = arith.addf %334, %364 : vector<1x256xf32>
      %c60 = arith.constant 60 : index
      %366 = memref.load %arg2[%c60] : memref<98xf32, #tpu.memory_space<smem>>
      %367 = vector.broadcast %366 : f32 to vector<1x256xf32>
      %368 = arith.mulf %367, %361 : vector<1x256xf32>
      %369 = arith.addf %338, %368 : vector<1x256xf32>
      %c67 = arith.constant 67 : index
      %370 = memref.load %arg2[%c67] : memref<98xf32, #tpu.memory_space<smem>>
      %371 = vector.broadcast %370 : f32 to vector<1x256xf32>
      %372 = arith.mulf %371, %361 : vector<1x256xf32>
      %373 = arith.addf %342, %372 : vector<1x256xf32>
      %c74 = arith.constant 74 : index
      %374 = memref.load %arg2[%c74] : memref<98xf32, #tpu.memory_space<smem>>
      %375 = vector.broadcast %374 : f32 to vector<1x256xf32>
      %376 = arith.mulf %375, %361 : vector<1x256xf32>
      %377 = arith.addf %346, %376 : vector<1x256xf32>
      %c81 = arith.constant 81 : index
      %378 = memref.load %arg2[%c81] : memref<98xf32, #tpu.memory_space<smem>>
      %379 = vector.broadcast %378 : f32 to vector<1x256xf32>
      %380 = arith.mulf %379, %361 : vector<1x256xf32>
      %381 = arith.addf %350, %380 : vector<1x256xf32>
      %c88 = arith.constant 88 : index
      %382 = memref.load %arg2[%c88] : memref<98xf32, #tpu.memory_space<smem>>
      %383 = vector.broadcast %382 : f32 to vector<1x256xf32>
      %384 = arith.mulf %383, %361 : vector<1x256xf32>
      %385 = arith.addf %354, %384 : vector<1x256xf32>
      %c95 = arith.constant 95 : index
      %386 = memref.load %arg2[%c95] : memref<98xf32, #tpu.memory_space<smem>>
      %387 = vector.broadcast %386 : f32 to vector<1x256xf32>
      %388 = arith.mulf %387, %361 : vector<1x256xf32>
      %389 = arith.addf %358, %388 : vector<1x256xf32>
      %c254_i32_34 = arith.constant 254 : i32
      %390 = tpu.dynamic_rotate %18 by %c254_i32_34 dim 1 : vector<1x256xf32>, i32 -> vector<1x256xf32>
      %cst_35 = arith.constant 0.000000e+00 : f32
      %391 = vector.broadcast %cst_35 : f32 to vector<1x256xf32>
      %392 = arith.select %28, %390, %391 : vector<1x256xi1>, vector<1x256xf32>
      %c54 = arith.constant 54 : index
      %393 = memref.load %arg2[%c54] : memref<98xf32, #tpu.memory_space<smem>>
      %394 = vector.broadcast %393 : f32 to vector<1x256xf32>
      %395 = arith.mulf %394, %392 : vector<1x256xf32>
      %396 = arith.addf %365, %395 : vector<1x256xf32>
      %c61 = arith.constant 61 : index
      %397 = memref.load %arg2[%c61] : memref<98xf32, #tpu.memory_space<smem>>
      %398 = vector.broadcast %397 : f32 to vector<1x256xf32>
      %399 = arith.mulf %398, %392 : vector<1x256xf32>
      %400 = arith.addf %369, %399 : vector<1x256xf32>
      %c68 = arith.constant 68 : index
      %401 = memref.load %arg2[%c68] : memref<98xf32, #tpu.memory_space<smem>>
      %402 = vector.broadcast %401 : f32 to vector<1x256xf32>
      %403 = arith.mulf %402, %392 : vector<1x256xf32>
      %404 = arith.addf %373, %403 : vector<1x256xf32>
      %c75 = arith.constant 75 : index
      %405 = memref.load %arg2[%c75] : memref<98xf32, #tpu.memory_space<smem>>
      %406 = vector.broadcast %405 : f32 to vector<1x256xf32>
      %407 = arith.mulf %406, %392 : vector<1x256xf32>
      %408 = arith.addf %377, %407 : vector<1x256xf32>
      %c82 = arith.constant 82 : index
      %409 = memref.load %arg2[%c82] : memref<98xf32, #tpu.memory_space<smem>>
      %410 = vector.broadcast %409 : f32 to vector<1x256xf32>
      %411 = arith.mulf %410, %392 : vector<1x256xf32>
      %412 = arith.addf %381, %411 : vector<1x256xf32>
      %c89 = arith.constant 89 : index
      %413 = memref.load %arg2[%c89] : memref<98xf32, #tpu.memory_space<smem>>
      %414 = vector.broadcast %413 : f32 to vector<1x256xf32>
      %415 = arith.mulf %414, %392 : vector<1x256xf32>
      %416 = arith.addf %385, %415 : vector<1x256xf32>
      %c96 = arith.constant 96 : index
      %417 = memref.load %arg2[%c96] : memref<98xf32, #tpu.memory_space<smem>>
      %418 = vector.broadcast %417 : f32 to vector<1x256xf32>
      %419 = arith.mulf %418, %392 : vector<1x256xf32>
      %420 = arith.addf %389, %419 : vector<1x256xf32>
      %c253_i32_36 = arith.constant 253 : i32
      %421 = tpu.dynamic_rotate %18 by %c253_i32_36 dim 1 : vector<1x256xf32>, i32 -> vector<1x256xf32>
      %cst_37 = arith.constant 0.000000e+00 : f32
      %422 = vector.broadcast %cst_37 : f32 to vector<1x256xf32>
      %423 = arith.select %30, %421, %422 : vector<1x256xi1>, vector<1x256xf32>
      %c55 = arith.constant 55 : index
      %424 = memref.load %arg2[%c55] : memref<98xf32, #tpu.memory_space<smem>>
      %425 = vector.broadcast %424 : f32 to vector<1x256xf32>
      %426 = arith.mulf %425, %423 : vector<1x256xf32>
      %427 = arith.addf %396, %426 : vector<1x256xf32>
      %c62 = arith.constant 62 : index
      %428 = memref.load %arg2[%c62] : memref<98xf32, #tpu.memory_space<smem>>
      %429 = vector.broadcast %428 : f32 to vector<1x256xf32>
      %430 = arith.mulf %429, %423 : vector<1x256xf32>
      %431 = arith.addf %400, %430 : vector<1x256xf32>
      %c69 = arith.constant 69 : index
      %432 = memref.load %arg2[%c69] : memref<98xf32, #tpu.memory_space<smem>>
      %433 = vector.broadcast %432 : f32 to vector<1x256xf32>
      %434 = arith.mulf %433, %423 : vector<1x256xf32>
      %435 = arith.addf %404, %434 : vector<1x256xf32>
      %c76 = arith.constant 76 : index
      %436 = memref.load %arg2[%c76] : memref<98xf32, #tpu.memory_space<smem>>
      %437 = vector.broadcast %436 : f32 to vector<1x256xf32>
      %438 = arith.mulf %437, %423 : vector<1x256xf32>
      %439 = arith.addf %408, %438 : vector<1x256xf32>
      %c83 = arith.constant 83 : index
      %440 = memref.load %arg2[%c83] : memref<98xf32, #tpu.memory_space<smem>>
      %441 = vector.broadcast %440 : f32 to vector<1x256xf32>
      %442 = arith.mulf %441, %423 : vector<1x256xf32>
      %443 = arith.addf %412, %442 : vector<1x256xf32>
      %c90 = arith.constant 90 : index
      %444 = memref.load %arg2[%c90] : memref<98xf32, #tpu.memory_space<smem>>
      %445 = vector.broadcast %444 : f32 to vector<1x256xf32>
      %446 = arith.mulf %445, %423 : vector<1x256xf32>
      %447 = arith.addf %416, %446 : vector<1x256xf32>
      %c97 = arith.constant 97 : index
      %448 = memref.load %arg2[%c97] : memref<98xf32, #tpu.memory_space<smem>>
      %449 = vector.broadcast %448 : f32 to vector<1x256xf32>
      %450 = arith.mulf %449, %423 : vector<1x256xf32>
      %451 = arith.addf %420, %450 : vector<1x256xf32>
      %c48_i32 = arith.constant 48 : i32
      %452 = tpu.dynamic_rotate %427 by %c48_i32 dim 1 : vector<1x256xf32>, i32 -> vector<1x256xf32>
      %c3_i32_38 = arith.constant 3 : i32
      %453 = vector.broadcast %c3_i32_38 : i32 to vector<1x256xi32>
      %454 = arith.cmpi sge, %16, %453 : vector<1x256xi32>
      %cst_39 = arith.constant 0.000000e+00 : f32
      %455 = vector.broadcast %cst_39 : f32 to vector<1x256xf32>
      %456 = arith.select %454, %452, %455 : vector<1x256xi1>, vector<1x256xf32>
      %457 = arith.addf %439, %456 : vector<1x256xf32>
      %c32_i32 = arith.constant 32 : i32
      %458 = tpu.dynamic_rotate %431 by %c32_i32 dim 1 : vector<1x256xf32>, i32 -> vector<1x256xf32>
      %c2_i32_40 = arith.constant 2 : i32
      %459 = vector.broadcast %c2_i32_40 : i32 to vector<1x256xi32>
      %460 = arith.cmpi sge, %16, %459 : vector<1x256xi32>
      %cst_41 = arith.constant 0.000000e+00 : f32
      %461 = vector.broadcast %cst_41 : f32 to vector<1x256xf32>
      %462 = arith.select %460, %458, %461 : vector<1x256xi1>, vector<1x256xf32>
      %463 = arith.addf %457, %462 : vector<1x256xf32>
      %c16_i32 = arith.constant 16 : i32
      %464 = tpu.dynamic_rotate %435 by %c16_i32 dim 1 : vector<1x256xf32>, i32 -> vector<1x256xf32>
      %c1_i32_42 = arith.constant 1 : i32
      %465 = vector.broadcast %c1_i32_42 : i32 to vector<1x256xi32>
      %466 = arith.cmpi sge, %16, %465 : vector<1x256xi32>
      %cst_43 = arith.constant 0.000000e+00 : f32
      %467 = vector.broadcast %cst_43 : f32 to vector<1x256xf32>
      %468 = arith.select %466, %464, %467 : vector<1x256xi1>, vector<1x256xf32>
      %469 = arith.addf %463, %468 : vector<1x256xf32>
      %c240_i32 = arith.constant 240 : i32
      %470 = tpu.dynamic_rotate %443 by %c240_i32 dim 1 : vector<1x256xf32>, i32 -> vector<1x256xf32>
      %c15_i32_44 = arith.constant 15 : i32
      %471 = vector.broadcast %c15_i32_44 : i32 to vector<1x256xi32>
      %472 = arith.cmpi slt, %16, %471 : vector<1x256xi32>
      %cst_45 = arith.constant 0.000000e+00 : f32
      %473 = vector.broadcast %cst_45 : f32 to vector<1x256xf32>
      %474 = arith.select %472, %470, %473 : vector<1x256xi1>, vector<1x256xf32>
      %475 = arith.addf %469, %474 : vector<1x256xf32>
      %c224_i32 = arith.constant 224 : i32
      %476 = tpu.dynamic_rotate %447 by %c224_i32 dim 1 : vector<1x256xf32>, i32 -> vector<1x256xf32>
      %c14_i32_46 = arith.constant 14 : i32
      %477 = vector.broadcast %c14_i32_46 : i32 to vector<1x256xi32>
      %478 = arith.cmpi slt, %16, %477 : vector<1x256xi32>
      %cst_47 = arith.constant 0.000000e+00 : f32
      %479 = vector.broadcast %cst_47 : f32 to vector<1x256xf32>
      %480 = arith.select %478, %476, %479 : vector<1x256xi1>, vector<1x256xf32>
      %481 = arith.addf %475, %480 : vector<1x256xf32>
      %c208_i32 = arith.constant 208 : i32
      %482 = tpu.dynamic_rotate %451 by %c208_i32 dim 1 : vector<1x256xf32>, i32 -> vector<1x256xf32>
      %c13_i32_48 = arith.constant 13 : i32
      %483 = vector.broadcast %c13_i32_48 : i32 to vector<1x256xi32>
      %484 = arith.cmpi slt, %16, %483 : vector<1x256xi32>
      %cst_49 = arith.constant 0.000000e+00 : f32
      %485 = vector.broadcast %cst_49 : f32 to vector<1x256xf32>
      %486 = arith.select %484, %482, %485 : vector<1x256xi1>, vector<1x256xf32>
      %487 = arith.addf %481, %486 : vector<1x256xf32>
      %488 = arith.negf %487 : vector<1x256xf32>
      %489 = math.exp %488 : vector<1x256xf32>
      %cst_50 = arith.constant 1.000000e+00 : f32
      %490 = vector.broadcast %cst_50 : f32 to vector<1x256xf32>
      %491 = arith.addf %490, %489 : vector<1x256xf32>
      %492 = arith.divf %490, %491 : vector<1x256xf32>
      %c0_51 = arith.constant 0 : index
      %c0_52 = arith.constant 0 : index
      %c0_53 = arith.constant 0 : index
      %493 = vector.load %arg6[%c0_51, %c0_52, %c0_53] : memref<1x1x256xf32, #tpu.memory_space<vmem>>, vector<1x1x256xf32>
      %494 = vector.shape_cast %493 : vector<1x1x256xf32> to vector<1x256xf32>
      %495 = vector.shape_cast %492 : vector<1x256xf32> to vector<1x1x256xf32>
      tpu.vector_store %arg6[%c0_51, %c0_52, %c0_53], %495 {strides = array<i32>} : memref<1x1x256xf32, #tpu.memory_space<vmem>>, vector<1x1x256xf32>,
    } else {
    }
    return
  }
  func.func @transform_0(%arg0: i32, %arg1: i32, %arg2: memref<98xf32, #tpu.memory_space<smem>>) -> (i32, i32, i32) {
    %c0_i32 = arith.constant 0 : i32
    %c0_i32_0 = arith.constant 0 : i32
    return %arg0, %arg1, %c0_i32 : i32, i32, i32
  }
  func.func @transform_1(%arg0: i32, %arg1: i32, %arg2: memref<98xf32, #tpu.memory_space<smem>>) -> (i32, i32) {
    %c0_i32 = arith.constant 0 : i32
    %c0_i32_0 = arith.constant 0 : i32
    %c0_i32_1 = arith.constant 0 : i32
    return %c0_i32, %c0_i32_0 : i32, i32
  }
  func.func @transform_2(%arg0: i32, %arg1: i32, %arg2: memref<98xf32, #tpu.memory_space<smem>>) -> (i32, i32) {
    %c0_i32 = arith.constant 0 : i32
    %c0_i32_0 = arith.constant 0 : i32
    %c0_i32_1 = arith.constant 0 : i32
    return %c0_i32, %c0_i32_0 : i32, i32
  }
  func.func @transform_3(%arg0: i32, %arg1: i32, %arg2: memref<98xf32, #tpu.memory_space<smem>>) -> (i32, i32, i32) {
    %c0_i32 = arith.constant 0 : i32
    %c0_i32_0 = arith.constant 0 : i32
    %c0_i32_1 = arith.constant 0 : i32
    return %arg0, %c0_i32, %c0_i32_0 : i32, i32, i32
  }
}

</mosaic_0001>

<llo_original>
// kernel: tpu_custom_call.1
$region0: #{tpu_custom_call.1}
  #allocation0 [shape = 'u32[]', space=smem, size = 0x4, offset = 0x4, fixed_abs, tag = 'smem constant byte address 0x4 - core index']
  #allocation1 [shape = 'u32[72,128]{1,0:T(1,128)}', space=vmem, size = 0x9000, scoped, tag = 'internal scratch']
  #allocation2 [shape = 'f32[1,256]{1,0:T(1,128)}', space=vmem, size = 0x400, scoped, tag = 'scratch operand']
  #allocation3 [shape = 'f32[1,256]{1,0:T(1,128)}', space=vmem, size = 0x400, scoped, tag = 'scratch operand']
  #allocation4 [shape = 's32[1]{0}', space=sflag, size = 0x4, scoped, tag = 'scoped memory for tpu_custom_call.1']
  #allocation5 [shape = 'u8[512]{0}', space=smem, size = 0x200, scoped, tag = 'prefetched SMEM operand 0']
  %s0 = inlined_call_operand.hbm [shape: f32[98], index: 0, kind: input, shape index: {}]
  %s1 = inlined_call_operand.hbm [shape: f32[2,4,256], index: 1, kind: input, shape index: {}]
  %s2 = inlined_call_operand.hbm [shape: s32[1,256], index: 2, kind: input, shape index: {}]
  %s3 = inlined_call_operand.vmem [shape: s32[1,256], index: 3, kind: input, shape index: {}]
  %s4 = inlined_call_operand.hbm [shape: f32[2,1,256], index: 4, kind: output, shape index: {}]
  %s5 = sld [smem:[#allocation0]]
  $region65: #{tpu_custom_call.1} parent=0
    _
  %s7 = ssub.s32 1, %s5
  %s8 = scalar_select 0, %s7, %s5
  %s10 = sshll.u32 %s0, 4
  %s11 = int_to_ptr.hbm [resolvable:$true] %s10
  %13 = dma.hbm_to_smem %s11, 16, [#allocation5], [#allocation4]
  %15 = dma.done [#allocation4], 16
  %16 = sfence
  $region1: #{tpu_custom_call.1} parent=0
    #allocation6 [shape = 'u8[8192]{0}', space=vmem, size = 0x2000, scoped, tag = 'input window, operand 1']
    #allocation7 [shape = 's32[2]{0}', space=sflag, size = 0x8, scoped, tag = 'scoped memory for tpu_custom_call.1']
    #allocation8 [shape = 's32[2]{0}', space=sflag, size = 0x8, scoped, tag = 'scoped memory for tpu_custom_call.1']
    #allocation9 [shape = 'u8[1024]{0}', space=vmem, size = 0x400, scoped, tag = 'input window, operand 2, single buffered']
    #allocation10 [shape = 's32[1]{0}', space=sflag, size = 0x4, scoped, tag = 'scoped memory for tpu_custom_call.1']
    #allocation11 [shape = 'u8[2048]{0}', space=vmem, size = 0x800, scoped, tag = 'output window, operand 0']
    %17 = vsyncpa [#allocation7], 0
    %s18 = scalar_lea.sflag [#allocation7], 1
    %19 = vsyncpa %s18, 0
    %20 = vsyncpa [#allocation10], 0
    %21 = vsyncpa [#allocation8], 0
    %s22 = scalar_lea.sflag [#allocation8], 1
    %23 = vsyncpa %s22, 0
    loop: start=0, step=1, limit=4
    $region2: #{tpu_custom_call.1} parent=1 // loop_pre_header
      _
    $region3: #{tpu_custom_call.1} parent=1 // loop_header
      %s25 = sphi 0, %s29
      %p26 = scmp.ge.s32.totalorder %s25, 4
      %s32 = sphi 0, %s44
      %s33 = sphi 0, %s40
      %s34 = sphi 0, %s32
      %s35 = sphi 0, %s33
      %s36 = sphi 0, %s34
      %s37 = sphi 0, %s35
      %s49 = sphi 0, %s51
      %s52 = sphi 0, %s49
      %s53 = sphi 0, %s52
      %s69 = sphi 0, %s53
      %s73 = sphi 0, %s73
      %s75 = sphi 0, %s73
      %s76 = sphi 0, %s75
      %s90 = sphi 0, %s76
      %s94 = sphi 0, %s94
      %s96 = sphi 0, %s94
      %s97 = sphi 0, %s96
      %s111 = sphi 0, %s97
      %s117 = sphi 0, %s119
      %s120 = sphi 0, %s117
      %s121 = sphi 0, %s120
      %s137 = sphi 0, %s121
    $region4: #{tpu_custom_call.1} parent=1 // loop_header_branch
      %28 = sbr.rel (%p26) target = $region8
    $region5: #{tpu_custom_call.1} parent=1 // loop_body
      %s30 = ssub.s32 %s25, 1
      %s31 = ssub.s32 %s25, 2
      %s38 = sadd.s32 1, %s33
      %p39 = scmp.ge.s32.totalorder %s38, 1
      %s40 = scalar_select %p39, 0, %s38
      %s41 = sadd.s32 1, %s32
      %s42 = scalar_select %p39, %s41, %s32
      %p43 = scmp.ge.s32.totalorder %s42, 2
      %s44 = scalar_select %p43, 0, %s42
      %s45 = ssub.s32 %s32, %s44
      %s46 = ssub.s32 %s33, %s40
      %s47 = sor.u32 %s45, %s46
      %p48 = scmp.eq.s32.totalorder %s47, 0
      %s50 = sadd.s32 %s49, 1
      %s51 = scalar_select %p48, %s49, %s50
      %p54 = pneg %p48
      %p55 = scmp.eq.s32.totalorder %s25, 1
      %p56 = por %p54, %p55
      %p57 = scmp.ne.s32.totalorder %s49, %s52
      %p58 = scmp.eq.s32.totalorder %s25, 0
      %p59 = por %p57, %p58
      %p60 = scmp.ne.s32.totalorder %s49, %s52
      %p61 = scmp.eq.s32.totalorder %s30, 1
      %p62 = por %p60, %p61
      %p63 = scmp.ne.s32.totalorder %s52, %s53
      %p64 = scmp.eq.s32.totalorder %s30, 0
      %p65 = por %p63, %p64
      %p66 = scmp.ne.s32.totalorder %s52, %s53
      %p67 = scmp.eq.s32.totalorder %s31, 1
      %p68 = por %p66, %p67
      %p70 = scmp.ne.s32.totalorder %s53, %s69
      %p71 = scmp.eq.s32.totalorder %s31, 0
      %p72 = por %p70, %p71
      %s74 = sadd.s32 %s73, 1
      %p77 = scmp.eq.s32.totalorder %s25, 1
      %p78 = scmp.ne.s32.totalorder %s73, %s75
      %p79 = scmp.eq.s32.totalorder %s25, 0
      %p80 = por %p78, %p79
      %p81 = scmp.ne.s32.totalorder %s73, %s75
      %p82 = scmp.eq.s32.totalorder %s30, 1
      %p83 = por %p81, %p82
      %p84 = scmp.ne.s32.totalorder %s75, %s76
      %p85 = scmp.eq.s32.totalorder %s30, 0
      %p86 = por %p84, %p85
      %p87 = scmp.ne.s32.totalorder %s75, %s76
      %p88 = scmp.eq.s32.totalorder %s31, 1
      %p89 = por %p87, %p88
      %p91 = scmp.ne.s32.totalorder %s76, %s90
      %p92 = scmp.eq.s32.totalorder %s31, 0
      %p93 = por %p91, %p92
      %s95 = sadd.s32 %s94, 1
      %p98 = scmp.eq.s32.totalorder %s25, 1
      %p99 = scmp.ne.s32.totalorder %s94, %s96
      %p100 = scmp.eq.s32.totalorder %s25, 0
      %p101 = por %p99, %p100
      %p102 = scmp.ne.s32.totalorder %s94, %s96
      %p103 = scmp.eq.s32.totalorder %s30, 1
      %p104 = por %p102, %p103
      %p105 = scmp.ne.s32.totalorder %s96, %s97
      %p106 = scmp.eq.s32.totalorder %s30, 0
      %p107 = por %p105, %p106
      %p108 = scmp.ne.s32.totalorder %s96, %s97
      %p109 = scmp.eq.s32.totalorder %s31, 1
      %p110 = por %p108, %p109
      %p112 = scmp.ne.s32.totalorder %s97, %s111
      %p113 = scmp.eq.s32.totalorder %s31, 0
      %p114 = por %p112, %p113
      %s115 = ssub.s32 %s32, %s44
      %p116 = scmp.eq.s32.totalorder %s115, 0
      %s118 = sadd.s32 %s117, 1
      %s119 = scalar_select %p116, %s117, %s118
      %p122 = pneg %p116
      %p123 = scmp.eq.s32.totalorder %s25, 1
      %p124 = por %p122, %p123
      %p125 = scmp.ne.s32.totalorder %s117, %s120
      %p126 = scmp.eq.s32.totalorder %s25, 0
      %p127 = por %p125, %p126
      %p128 = scmp.ne.s32.totalorder %s117, %s120
      %p129 = scmp.eq.s32.totalorder %s30, 1
      %p130 = por %p128, %p129
      %p131 = scmp.ne.s32.totalorder %s120, %s121
      %p132 = scmp.eq.s32.totalorder %s30, 0
      %p133 = por %p131, %p132
      %p134 = scmp.ne.s32.totalorder %s120, %s121
      %p135 = scmp.eq.s32.totalorder %s31, 1
      %p136 = por %p134, %p135
      %p138 = scmp.ne.s32.totalorder %s121, %s137
      %p139 = scmp.eq.s32.totalorder %s31, 0
      %p140 = por %p138, %p139
      %p141 = scmp.le.s32.totalorder 1, %s25
      %p142 = scmp.lt.s32.totalorder %s25, 3
      %p143 = pnand %p141, %p142
      %p144 = pneg %p143
      // Predicated region
      $region9: #{tpu_custom_call.1} parent=5 // pred_check
        _
      $region10: #{tpu_custom_call.1} parent=5 // pred_check_branch
        %146 = sbr.rel (%p143) target = $region12
      $region11: #{tpu_custom_call.1} parent=5 // pred_region
        %s147 = ssub.s32 %s25, 1
        // Predicated region
        $region13: #{tpu_custom_call.1} parent=11 // pred_check
          %p148 = pneg %p86
        $region14: #{tpu_custom_call.1} parent=11 // pred_check_branch
          %150 = sbr.rel (%p148) target = $region16
        $region15: #{tpu_custom_call.1} parent=11 // pred_region
          %152 = vsyncadd [#allocation10], 0
          %s154 = sshll.u32 %s2, 4
          %s155 = int_to_ptr.hbm [resolvable:$true] %s154
          %s156 = sshll.u32 [#allocation9], 4
          %s157 = int_to_ptr.vmem [resolvable:$true] %s156
          %159 = dma.hbm_to_vmem [thread:$0]  %s155, 32, %s157, [#allocation10]
        $region16: #{tpu_custom_call.1} parent=11 // pred_fallthru
          _
        // Predicated region
        $region17: #{tpu_custom_call.1} parent=11 // pred_check
          %p160 = pneg %p107
        $region18: #{tpu_custom_call.1} parent=11 // pred_check_branch
          %162 = sbr.rel (%p160) target = $region20
        $region19: #{tpu_custom_call.1} parent=11 // pred_region
          _
        $region20: #{tpu_custom_call.1} parent=11 // pred_fallthru
          _
      $region12: #{tpu_custom_call.1} parent=5 // pred_fallthru
        _
      %p163 = scmp.lt.s32.totalorder %s25, 2
      // Predicated region
      $region21: #{tpu_custom_call.1} parent=5 // pred_check
        %p164 = pneg %p163
      $region22: #{tpu_custom_call.1} parent=5 // pred_check_branch
        %166 = sbr.rel (%p164) target = $region24
      $region23: #{tpu_custom_call.1} parent=5 // pred_region
        // Predicated region
        $region25: #{tpu_custom_call.1} parent=23 // pred_check
          %p167 = pneg %p59
        $region26: #{tpu_custom_call.1} parent=23 // pred_check_branch
          %169 = sbr.rel (%p167) target = $region28
        $region27: #{tpu_custom_call.1} parent=23 // pred_region
          %s170 = sand.u32 %s49, 1
          %s171 = scalar_lea.sflag [#allocation7], %s170
          %s172 = sand.u32 %s49, 1
          %s173 = smul.addr %s172, 8
          %s174 = scalar_lea.vmem [#allocation6], %s173
          %176 = vsyncadd %s171, 0
          %s177 = smul.addr %s33, 2
          %s178 = smul.addr %s32, 2
          %s179 = sadd.s32 %s177, %s178
          %s180 = smul.addr %s179, 4
          %s181 = scalar_lea.hbm %s1, %s180
          %s183 = sshll.u32 %s181, 4
          %s184 = int_to_ptr.hbm [resolvable:$true] %s183
          %s185 = sshll.u32 %s174, 4
          %s186 = int_to_ptr.vmem [resolvable:$true] %s185
          %188 = dma.hbm_to_vmem [thread:$0]  %s184, 128, %s186, %s171
        $region28: #{tpu_custom_call.1} parent=23 // pred_fallthru
          _
      $region24: #{tpu_custom_call.1} parent=5 // pred_fallthru
        _
      %p189 = scmp.le.s32.totalorder 1, %s25
      %p190 = scmp.lt.s32.totalorder %s25, 3
      %p191 = pnand %p189, %p190
      %p192 = pneg %p191
      // Predicated region
      $region29: #{tpu_custom_call.1} parent=5 // pred_check
        _
      $region30: #{tpu_custom_call.1} parent=5 // pred_check_branch
        %194 = sbr.rel (%p191) target = $region32
      $region31: #{tpu_custom_call.1} parent=5 // pred_region
        %s195 = ssub.s32 %s25, 1
        %s196 = sand.u32 %s52, 1
        %s197 = scalar_lea.sflag [#allocation7], %s196
        %s198 = sand.u32 %s52, 1
        %s199 = smul.addr %s198, 8
        %s200 = scalar_lea.vmem [#allocation6], %s199
        // Predicated region
        $region33: #{tpu_custom_call.1} parent=31 // pred_check
          %p201 = pneg %p65
        $region34: #{tpu_custom_call.1} parent=31 // pred_check_branch
          %203 = sbr.rel (%p201) target = $region36
        $region35: #{tpu_custom_call.1} parent=31 // pred_region
          %205 = dma.done %s197, 128
        $region36: #{tpu_custom_call.1} parent=31 // pred_fallthru
          _
        // Predicated region
        $region37: #{tpu_custom_call.1} parent=31 // pred_check
          %p206 = pneg %p86
        $region38: #{tpu_custom_call.1} parent=31 // pred_check_branch
          %208 = sbr.rel (%p206) target = $region40
        $region39: #{tpu_custom_call.1} parent=31 // pred_region
          %210 = dma.done [#allocation10], 32
        $region40: #{tpu_custom_call.1} parent=31 // pred_fallthru
          _
        %s211 = sand.u32 %s52, 1
        %s212 = scalar_lea.sflag [#allocation7], %s211
        %s213 = sand.u32 %s52, 1
        %s214 = smul.addr %s213, 8
        %s215 = scalar_lea.vmem [#allocation6], %s214
        %p216 = pneg %p65
        %p217 = pneg %p62
        %p218 = pneg %p86
        %p219 = pneg %p83
        %p220 = pneg %p107
        %p221 = pneg %p104
        %p222 = pneg %p133
        %p223 = pneg %p130
        %s224 = sand.u32 %s120, 1
        %s225 = scalar_lea.sflag [#allocation8], %s224
        %s226 = sand.u32 %s120, 1
        %s227 = smul.addr %s226, 2
        %s228 = scalar_lea.vmem [#allocation11], %s227
        %v229 = vld [vmem:[%s200] sm:$0xff]
        %231 = vst [vmem:[#allocation1] ss:$2 sm:$0xff] %v229
        %v232 = vld.sshfl [vmem:[#allocation1] sm:$0xff pattern:$0x75316420]
        %v233 = vld.sshfl [vmem:[#allocation1 + $0x8] sm:$0xff pattern:$0x75316420]
        %vm236 = vcmask 1043456
        %v237 = vsel %vm236, %v232, 0.0
        %v238 = vrot.slane %v237, 4
        %v239 = vadd.f32 %v237, %v238
        %v240 = vrot.slane %v239, 2
        %v241 = vadd.f32 %v239, %v240
        %v242 = vrot.slane %v241, 1
        %v243 = vadd.f32 %v241, %v242
        %v244 = vsel %vm236, %v233, 0.0
        %v245 = vrot.slane %v244, 4
        %v246 = vadd.f32 %v244, %v245
        %v247 = vrot.slane %v246, 2
        %v248 = vadd.f32 %v246, %v247
        %v249 = vrot.slane %v248, 1
        %v250 = vadd.f32 %v248, %v249
        %251 = vst [vmem:[#allocation1] ss:$2 sm:$0xff] %v229
        %v252 = vld.sshfl [vmem:[#allocation1] sm:$0xff pattern:$0x75316420]
        %v253 = vld.sshfl [vmem:[#allocation1 + $0x8] sm:$0xff pattern:$0x75316420]
        %v256 = vsel %vm236, %v252, -inf
        %v257 = vrot.slane %v256, 4
        %v258 = vmax.f32 %v256, %v257
        %v259 = vrot.slane %v258, 2
        %v260 = vmax.f32 %v258, %v259
        %v261 = vrot.slane %v260, 1
        %v262 = vmax.f32 %v260, %v261
        %v263 = vsel %vm236, %v253, -inf
        %v264 = vrot.slane %v263, 4
        %v265 = vmax.f32 %v263, %v264
        %v266 = vrot.slane %v265, 2
        %v267 = vmax.f32 %v265, %v266
        %v268 = vrot.slane %v267, 1
        %v269 = vmax.f32 %v267, %v268
        %p270 = scmp.eq.s32.totalorder %s35, 0
        // Predicated region
        $region41: #{tpu_custom_call.1} parent=31 // pred_check
          %p271 = pneg %p270
        $region42: #{tpu_custom_call.1} parent=31 // pred_check_branch
          %273 = sbr.rel (%p271) target = $region44
        $region43: #{tpu_custom_call.1} parent=31 // pred_region
          %v276 = vrot.slane %v250, 7
          %vm277 = vcmask 1040384
          %v278 = vsel %vm277, %v243, %v276
          %v280 = vlaneseq
          %vm281 = vcmp.ge.s32.totalorder %v280, 0
          %vm282 = vcmp.lt.s32.totalorder %v280, 256
          %vm283 = vmand %vm281, %vm282
          %284 = vst.msk [vmem:[#allocation2] sm:$0x3] %vm283, %v278
          %v287 = vrot.slane %v269, 7
          %v288 = vsel %vm277, %v262, %v287
          %290 = vst.msk [vmem:[#allocation3] sm:$0x3] %vm283, %v288
        $region44: #{tpu_custom_call.1} parent=31 // pred_fallthru
          _
        %p291 = scmp.gt.s32.totalorder %s35, 0
        // Predicated region
        $region45: #{tpu_custom_call.1} parent=31 // pred_check
          %p292 = pneg %p291
        $region46: #{tpu_custom_call.1} parent=31 // pred_check_branch
          %294 = sbr.rel (%p292) target = $region48
        $region47: #{tpu_custom_call.1} parent=31 // pred_region
          %v295 = vld [vmem:[#allocation2] sm:$0x3]
          %v298 = vrot.slane %v250, 7
          %vm299 = vcmask 1040384
          %v300 = vsel %vm299, %v243, %v298
          %v302 = vadd.f32 %v295, %v300
          %v303 = vlaneseq
          %vm304 = vcmp.ge.s32.totalorder %v303, 0
          %vm305 = vcmp.lt.s32.totalorder %v303, 256
          %vm306 = vmand %vm304, %vm305
          %307 = vst.msk [vmem:[#allocation2] sm:$0x3] %vm306, %v302
          %v308 = vld [vmem:[#allocation3] sm:$0x3]
          %v311 = vrot.slane %v269, 7
          %v312 = vsel %vm299, %v262, %v311
          %v314 = vmax.f32 %v308, %v312
          %315 = vst.msk [vmem:[#allocation3] sm:$0x3] %vm306, %v314
        $region48: #{tpu_custom_call.1} parent=31 // pred_fallthru
          _
        // Predicated region
        $region49: #{tpu_custom_call.1} parent=31 // pred_check
          %p316 = pneg %p270
        $region50: #{tpu_custom_call.1} parent=31 // pred_check_branch
          %318 = sbr.rel (%p316) target = $region52
        $region51: #{tpu_custom_call.1} parent=31 // pred_region
          %v319 = vld [vmem:[#allocation9] sm:$0x3]
          %v320 = vld [vmem:[%s3] sm:$0x3]
          %v321 = vld [vmem:[#allocation2] sm:$0x3]
          %v322 = vld [vmem:[#allocation3] sm:$0x3]
          %vm323 = vcmp.ge.s32.totalorder %v319, 3
          %vm324 = vcmp.ge.s32.totalorder %v319, 2
          %vm325 = vcmp.ge.s32.totalorder %v319, 1
          %vm326 = vcmp.lt.s32.totalorder %v319, 15
          %vm327 = vcmp.lt.s32.totalorder %v319, 14
          %vm328 = vcmp.lt.s32.totalorder %v319, 13
          %v330 = vperm.slane %v321, 0
          %v331 = vperm.slane %v321, 1
          %334 = vrot.lane.b32.xlu0 %v330, 3
          %v335 = vpop.permute.xlu0 %334
          %336 = vrot.lane.b32.xlu0 %v331, 3
          %v337 = vpop.permute.xlu0 %336
          %v338 = vlaneseq
          %v339 = vand.u32 %v338, 127
          %vm340 = vcmp.lt.s32.totalorder %v339, 3
          %v341 = vsel %vm340, %v335, %v337
          %v342 = vsel %vm340, %v337, %v335
          %v345 = vrot.slane %v341, 7
          %vm346 = vcmask 1040384
          %v347 = vsel %vm346, %v342, %v345
          %v349 = vsel %vm323, %v347, 0.0
          %s350 = sld [smem:[#allocation5]]
          %v351 = vstv %s350
          %v352 = vmul.f32 %v351, %v349
          %s353 = sld [smem:[#allocation5 + $0x7]]
          %v354 = vstv %s353
          %v355 = vmul.f32 %v354, %v349
          %s356 = sld [smem:[#allocation5 + $0xe]]
          %v357 = vstv %s356
          %v358 = vmul.f32 %v357, %v349
          %s359 = sld [smem:[#allocation5 + $0x15]]
          %v360 = vstv %s359
          %v361 = vmul.f32 %v360, %v349
          %s362 = sld [smem:[#allocation5 + $0x1c]]
          %v363 = vstv %s362
          %v364 = vmul.f32 %v363, %v349
          %s365 = sld [smem:[#allocation5 + $0x23]]
          %v366 = vstv %s365
          %v367 = vmul.f32 %v366, %v349
          %s368 = sld [smem:[#allocation5 + $0x2a]]
          %v369 = vstv %s368
          %v370 = vmul.f32 %v369, %v349
          %371 = vrot.lane.b32.xlu0 %v330, 2
          %v372 = vpop.permute.xlu0 %371
          %373 = vrot.lane.b32.xlu0 %v331, 2
          %v374 = vpop.permute.xlu0 %373
          %vm375 = vcmp.lt.s32.totalorder %v339, 2
          %v376 = vsel %vm375, %v372, %v374
          %v377 = vsel %vm375, %v374, %v372
          %v380 = vrot.slane %v376, 7
          %v381 = vsel %vm346, %v377, %v380
          %v383 = vsel %vm324, %v381, 0.0
          %s384 = sld [smem:[#allocation5 + $0x1]]
          %v385 = vstv %s384
          %v386 = vmul.f32 %v385, %v383
          %v387 = vadd.f32 %v352, %v386
          %s388 = sld [smem:[#allocation5 + $0x8]]
          %v389 = vstv %s388
          %v390 = vmul.f32 %v389, %v383
          %v391 = vadd.f32 %v355, %v390
          %s392 = sld [smem:[#allocation5 + $0xf]]
          %v393 = vstv %s392
          %v394 = vmul.f32 %v393, %v383
          %v395 = vadd.f32 %v358, %v394
          %s396 = sld [smem:[#allocation5 + $0x16]]
          %v397 = vstv %s396
          %v398 = vmul.f32 %v397, %v383
          %v399 = vadd.f32 %v361, %v398
          %s400 = sld [smem:[#allocation5 + $0x1d]]
          %v401 = vstv %s400
          %v402 = vmul.f32 %v401, %v383
          %v403 = vadd.f32 %v364, %v402
          %s404 = sld [smem:[#allocation5 + $0x24]]
          %v405 = vstv %s404
          %v406 = vmul.f32 %v405, %v383
          %v407 = vadd.f32 %v367, %v406
          %s408 = sld [smem:[#allocation5 + $0x2b]]
          %v409 = vstv %s408
          %v410 = vmul.f32 %v409, %v383
          %v411 = vadd.f32 %v370, %v410
          %412 = vrot.lane.b32.xlu0 %v330, 1
          %v413 = vpop.permute.xlu0 %412
          %414 = vrot.lane.b32.xlu0 %v331, 1
          %v415 = vpop.permute.xlu0 %414
          %vm416 = vcmp.lt.s32.totalorder %v339, 1
          %v417 = vsel %vm416, %v413, %v415
          %v418 = vsel %vm416, %v415, %v413
          %v421 = vrot.slane %v417, 7
          %v422 = vsel %vm346, %v418, %v421
          %v424 = vsel %vm325, %v422, 0.0
          %s425 = sld [smem:[#allocation5 + $0x2]]
          %v426 = vstv %s425
          %v427 = vmul.f32 %v426, %v424
          %v428 = vadd.f32 %v387, %v427
          %s429 = sld [smem:[#allocation5 + $0x9]]
          %v430 = vstv %s429
          %v431 = vmul.f32 %v430, %v424
          %v432 = vadd.f32 %v391, %v431
          %s433 = sld [smem:[#allocation5 + $0x10]]
          %v434 = vstv %s433
          %v435 = vmul.f32 %v434, %v424
          %v436 = vadd.f32 %v395, %v435
          %s437 = sld [smem:[#allocation5 + $0x17]]
          %v438 = vstv %s437
          %v439 = vmul.f32 %v438, %v424
          %v440 = vadd.f32 %v399, %v439
          %s441 = sld [smem:[#allocation5 + $0x1e]]
          %v442 = vstv %s441
          %v443 = vmul.f32 %v442, %v424
          %v444 = vadd.f32 %v403, %v443
          %s445 = sld [smem:[#allocation5 + $0x25]]
          %v446 = vstv %s445
          %v447 = vmul.f32 %v446, %v424
          %v448 = vadd.f32 %v407, %v447
          %s449 = sld [smem:[#allocation5 + $0x2c]]
          %v450 = vstv %s449
          %v451 = vmul.f32 %v450, %v424
          %v452 = vadd.f32 %v411, %v451
          %s453 = sld [smem:[#allocation5 + $0x3]]
          %v454 = vstv %s453
          %v455 = vmul.f32 %v454, %v321
          %v456 = vadd.f32 %v428, %v455
          %s457 = sld [smem:[#allocation5 + $0xa]]
          %v458 = vstv %s457
          %v459 = vmul.f32 %v458, %v321
          %v460 = vadd.f32 %v432, %v459
          %s461 = sld [smem:[#allocation5 + $0x11]]
          %v462 = vstv %s461
          %v463 = vmul.f32 %v462, %v321
          %v464 = vadd.f32 %v436, %v463
          %s465 = sld [smem:[#allocation5 + $0x18]]
          %v466 = vstv %s465
          %v467 = vmul.f32 %v466, %v321
          %v468 = vadd.f32 %v440, %v467
          %s469 = sld [smem:[#allocation5 + $0x1f]]
          %v470 = vstv %s469
          %v471 = vmul.f32 %v470, %v321
          %v472 = vadd.f32 %v444, %v471
          %s473 = sld [smem:[#allocation5 + $0x26]]
          %v474 = vstv %s473
          %v475 = vmul.f32 %v474, %v321
          %v476 = vadd.f32 %v448, %v475
          %s477 = sld [smem:[#allocation5 + $0x2d]]
          %v478 = vstv %s477
          %v479 = vmul.f32 %v478, %v321
          %v480 = vadd.f32 %v452, %v479
          %481 = vrot.lane.b32.xlu0 %v330, 127
          %v482 = vpop.permute.xlu0 %481
          %483 = vrot.lane.b32.xlu0 %v331, 127
          %v484 = vpop.permute.xlu0 %483
          %vm485 = vcmp.lt.s32.totalorder %v339, 127
          %v486 = vsel %vm485, %v482, %v484
          %v487 = vsel %vm485, %v484, %v482
          %v490 = vrot.slane %v487, 7
          %v491 = vsel %vm346, %v486, %v490
          %v493 = vsel %vm326, %v491, 0.0
          %s494 = sld [smem:[#allocation5 + $0x4]]
          %v495 = vstv %s494
          %v496 = vmul.f32 %v495, %v493
          %v497 = vadd.f32 %v456, %v496
          %s498 = sld [smem:[#allocation5 + $0xb]]
          %v499 = vstv %s498
          %v500 = vmul.f32 %v499, %v493
          %v501 = vadd.f32 %v460, %v500
          %s502 = sld [smem:[#allocation5 + $0x12]]
          %v503 = vstv %s502
          %v504 = vmul.f32 %v503, %v493
          %v505 = vadd.f32 %v464, %v504
          %s506 = sld [smem:[#allocation5 + $0x19]]
          %v507 = vstv %s506
          %v508 = vmul.f32 %v507, %v493
          %v509 = vadd.f32 %v468, %v508
          %s510 = sld [smem:[#allocation5 + $0x20]]
          %v511 = vstv %s510
          %v512 = vmul.f32 %v511, %v493
          %v513 = vadd.f32 %v472, %v512
          %s514 = sld [smem:[#allocation5 + $0x27]]
          %v515 = vstv %s514
          %v516 = vmul.f32 %v515, %v493
          %v517 = vadd.f32 %v476, %v516
          %s518 = sld [smem:[#allocation5 + $0x2e]]
          %v519 = vstv %s518
          %v520 = vmul.f32 %v519, %v493
          %v521 = vadd.f32 %v480, %v520
          %522 = vrot.lane.b32.xlu0 %v330, 126
          %v523 = vpop.permute.xlu0 %522
          %524 = vrot.lane.b32.xlu0 %v331, 126
          %v525 = vpop.permute.xlu0 %524
          %vm526 = vcmp.lt.s32.totalorder %v339, 126
          %v527 = vsel %vm526, %v523, %v525
          %v528 = vsel %vm526, %v525, %v523
          %v531 = vrot.slane %v528, 7
          %v532 = vsel %vm346, %v527, %v531
          %v534 = vsel %vm327, %v532, 0.0
          %s535 = sld [smem:[#allocation5 + $0x5]]
          %v536 = vstv %s535
          %v537 = vmul.f32 %v536, %v534
          %v538 = vadd.f32 %v497, %v537
          %s539 = sld [smem:[#allocation5 + $0xc]]
          %v540 = vstv %s539
          %v541 = vmul.f32 %v540, %v534
          %v542 = vadd.f32 %v501, %v541
          %s543 = sld [smem:[#allocation5 + $0x13]]
          %v544 = vstv %s543
          %v545 = vmul.f32 %v544, %v534
          %v546 = vadd.f32 %v505, %v545
          %s547 = sld [smem:[#allocation5 + $0x1a]]
          %v548 = vstv %s547
          %v549 = vmul.f32 %v548, %v534
          %v550 = vadd.f32 %v509, %v549
          %s551 = sld [smem:[#allocation5 + $0x21]]
          %v552 = vstv %s551
          %v553 = vmul.f32 %v552, %v534
          %v554 = vadd.f32 %v513, %v553
          %s555 = sld [smem:[#allocation5 + $0x28]]
          %v556 = vstv %s555
          %v557 = vmul.f32 %v556, %v534
          %v558 = vadd.f32 %v517, %v557
          %s559 = sld [smem:[#allocation5 + $0x2f]]
          %v560 = vstv %s559
          %v561 = vmul.f32 %v560, %v534
          %v562 = vadd.f32 %v521, %v561
          %563 = vrot.lane.b32.xlu0 %v330, 125
          %v564 = vpop.permute.xlu0 %563
          %565 = vrot.lane.b32.xlu0 %v331, 125
          %v566 = vpop.permute.xlu0 %565
          %vm567 = vcmp.lt.s32.totalorder %v339, 125
          %v568 = vsel %vm567, %v564, %v566
          %v569 = vsel %vm567, %v566, %v564
          %v572 = vrot.slane %v569, 7
          %v573 = vsel %vm346, %v568, %v572
          %v575 = vsel %vm328, %v573, 0.0
          %s576 = sld [smem:[#allocation5 + $0x6]]
          %v577 = vstv %s576
          %v578 = vmul.f32 %v577, %v575
          %v579 = vadd.f32 %v538, %v578
          %s580 = sld [smem:[#allocation5 + $0xd]]
          %v581 = vstv %s580
          %v582 = vmul.f32 %v581, %v575
          %v583 = vadd.f32 %v542, %v582
          %s584 = sld [smem:[#allocation5 + $0x14]]
          %v585 = vstv %s584
          %v586 = vmul.f32 %v585, %v575
          %v587 = vadd.f32 %v546, %v586
          %s588 = sld [smem:[#allocation5 + $0x1b]]
          %v589 = vstv %s588
          %v590 = vmul.f32 %v589, %v575
          %v591 = vadd.f32 %v550, %v590
          %s592 = sld [smem:[#allocation5 + $0x22]]
          %v593 = vstv %s592
          %v594 = vmul.f32 %v593, %v575
          %v595 = vadd.f32 %v554, %v594
          %s596 = sld [smem:[#allocation5 + $0x29]]
          %v597 = vstv %s596
          %v598 = vmul.f32 %v597, %v575
          %v599 = vadd.f32 %v558, %v598
          %s600 = sld [smem:[#allocation5 + $0x30]]
          %v601 = vstv %s600
          %v602 = vmul.f32 %v601, %v575
          %v603 = vadd.f32 %v562, %v602
          %v605 = vperm.slane %v322, 0
          %v606 = vperm.slane %v322, 1
          %609 = vrot.lane.b32.xlu0 %v605, 3
          %v610 = vpop.permute.xlu0 %609
          %611 = vrot.lane.b32.xlu0 %v606, 3
          %v612 = vpop.permute.xlu0 %611
          %v613 = vsel %vm340, %v610, %v612
          %v614 = vsel %vm340, %v612, %v610
          %v617 = vrot.slane %v613, 7
          %v618 = vsel %vm346, %v614, %v617
          %v620 = vsel %vm323, %v618, 0.0
          %s621 = sld [smem:[#allocation5 + $0x31]]
          %v622 = vstv %s621
          %v623 = vmul.f32 %v622, %v620
          %v624 = vadd.f32 %v579, %v623
          %s625 = sld [smem:[#allocation5 + $0x38]]
          %v626 = vstv %s625
          %v627 = vmul.f32 %v626, %v620
          %v628 = vadd.f32 %v583, %v627
          %s629 = sld [smem:[#allocation5 + $0x3f]]
          %v630 = vstv %s629
          %v631 = vmul.f32 %v630, %v620
          %v632 = vadd.f32 %v587, %v631
          %s633 = sld [smem:[#allocation5 + $0x46]]
          %v634 = vstv %s633
          %v635 = vmul.f32 %v634, %v620
          %v636 = vadd.f32 %v591, %v635
          %s637 = sld [smem:[#allocation5 + $0x4d]]
          %v638 = vstv %s637
          %v639 = vmul.f32 %v638, %v620
          %v640 = vadd.f32 %v595, %v639
          %s641 = sld [smem:[#allocation5 + $0x54]]
          %v642 = vstv %s641
          %v643 = vmul.f32 %v642, %v620
          %v644 = vadd.f32 %v599, %v643
          %s645 = sld [smem:[#allocation5 + $0x5b]]
          %v646 = vstv %s645
          %v647 = vmul.f32 %v646, %v620
          %v648 = vadd.f32 %v603, %v647
          %649 = vrot.lane.b32.xlu0 %v605, 2
          %v650 = vpop.permute.xlu0 %649
          %651 = vrot.lane.b32.xlu0 %v606, 2
          %v652 = vpop.permute.xlu0 %651
          %v653 = vsel %vm375, %v650, %v652
          %v654 = vsel %vm375, %v652, %v650
          %v657 = vrot.slane %v653, 7
          %v658 = vsel %vm346, %v654, %v657
          %v660 = vsel %vm324, %v658, 0.0
          %s661 = sld [smem:[#allocation5 + $0x32]]
          %v662 = vstv %s661
          %v663 = vmul.f32 %v662, %v660
          %v664 = vadd.f32 %v624, %v663
          %s665 = sld [smem:[#allocation5 + $0x39]]
          %v666 = vstv %s665
          %v667 = vmul.f32 %v666, %v660
          %v668 = vadd.f32 %v628, %v667
          %s669 = sld [smem:[#allocation5 + $0x40]]
          %v670 = vstv %s669
          %v671 = vmul.f32 %v670, %v660
          %v672 = vadd.f32 %v632, %v671
          %s673 = sld [smem:[#allocation5 + $0x47]]
          %v674 = vstv %s673
          %v675 = vmul.f32 %v674, %v660
          %v676 = vadd.f32 %v636, %v675
          %s677 = sld [smem:[#allocation5 + $0x4e]]
          %v678 = vstv %s677
          %v679 = vmul.f32 %v678, %v660
          %v680 = vadd.f32 %v640, %v679
          %s681 = sld [smem:[#allocation5 + $0x55]]
          %v682 = vstv %s681
          %v683 = vmul.f32 %v682, %v660
          %v684 = vadd.f32 %v644, %v683
          %s685 = sld [smem:[#allocation5 + $0x5c]]
          %v686 = vstv %s685
          %v687 = vmul.f32 %v686, %v660
          %v688 = vadd.f32 %v648, %v687
          %689 = vrot.lane.b32.xlu0 %v605, 1
          %v690 = vpop.permute.xlu0 %689
          %691 = vrot.lane.b32.xlu0 %v606, 1
          %v692 = vpop.permute.xlu0 %691
          %v693 = vsel %vm416, %v690, %v692
          %v694 = vsel %vm416, %v692, %v690
          %v697 = vrot.slane %v693, 7
          %v698 = vsel %vm346, %v694, %v697
          %v700 = vsel %vm325, %v698, 0.0
          %s701 = sld [smem:[#allocation5 + $0x33]]
          %v702 = vstv %s701
          %v703 = vmul.f32 %v702, %v700
          %v704 = vadd.f32 %v664, %v703
          %s705 = sld [smem:[#allocation5 + $0x3a]]
          %v706 = vstv %s705
          %v707 = vmul.f32 %v706, %v700
          %v708 = vadd.f32 %v668, %v707
          %s709 = sld [smem:[#allocation5 + $0x41]]
          %v710 = vstv %s709
          %v711 = vmul.f32 %v710, %v700
          %v712 = vadd.f32 %v672, %v711
          %s713 = sld [smem:[#allocation5 + $0x48]]
          %v714 = vstv %s713
          %v715 = vmul.f32 %v714, %v700
          %v716 = vadd.f32 %v676, %v715
          %s717 = sld [smem:[#allocation5 + $0x4f]]
          %v718 = vstv %s717
          %v719 = vmul.f32 %v718, %v700
          %v720 = vadd.f32 %v680, %v719
          %s721 = sld [smem:[#allocation5 + $0x56]]
          %v722 = vstv %s721
          %v723 = vmul.f32 %v722, %v700
          %v724 = vadd.f32 %v684, %v723
          %s725 = sld [smem:[#allocation5 + $0x5d]]
          %v726 = vstv %s725
          %v727 = vmul.f32 %v726, %v700
          %v728 = vadd.f32 %v688, %v727
          %s729 = sld [smem:[#allocation5 + $0x34]]
          %v730 = vstv %s729
          %v731 = vmul.f32 %v730, %v322
          %v732 = vadd.f32 %v704, %v731
          %s733 = sld [smem:[#allocation5 + $0x3b]]
          %v734 = vstv %s733
          %v735 = vmul.f32 %v734, %v322
          %v736 = vadd.f32 %v708, %v735
          %s737 = sld [smem:[#allocation5 + $0x42]]
          %v738 = vstv %s737
          %v739 = vmul.f32 %v738, %v322
          %v740 = vadd.f32 %v712, %v739
          %s741 = sld [smem:[#allocation5 + $0x49]]
          %v742 = vstv %s741
          %v743 = vmul.f32 %v742, %v322
          %v744 = vadd.f32 %v716, %v743
          %s745 = sld [smem:[#allocation5 + $0x50]]
          %v746 = vstv %s745
          %v747 = vmul.f32 %v746, %v322
          %v748 = vadd.f32 %v720, %v747
          %s749 = sld [smem:[#allocation5 + $0x57]]
          %v750 = vstv %s749
          %v751 = vmul.f32 %v750, %v322
          %v752 = vadd.f32 %v724, %v751
          %s753 = sld [smem:[#allocation5 + $0x5e]]
          %v754 = vstv %s753
          %v755 = vmul.f32 %v754, %v322
          %v756 = vadd.f32 %v728, %v755
          %757 = vrot.lane.b32.xlu0 %v605, 127
          %v758 = vpop.permute.xlu0 %757
          %759 = vrot.lane.b32.xlu0 %v606, 127
          %v760 = vpop.permute.xlu0 %759
          %v761 = vsel %vm485, %v758, %v760
          %v762 = vsel %vm485, %v760, %v758
          %v765 = vrot.slane %v762, 7
          %v766 = vsel %vm346, %v761, %v765
          %v768 = vsel %vm326, %v766, 0.0
          %s769 = sld [smem:[#allocation5 + $0x35]]
          %v770 = vstv %s769
          %v771 = vmul.f32 %v770, %v768
          %v772 = vadd.f32 %v732, %v771
          %s773 = sld [smem:[#allocation5 + $0x3c]]
          %v774 = vstv %s773
          %v775 = vmul.f32 %v774, %v768
          %v776 = vadd.f32 %v736, %v775
          %s777 = sld [smem:[#allocation5 + $0x43]]
          %v778 = vstv %s777
          %v779 = vmul.f32 %v778, %v768
          %v780 = vadd.f32 %v740, %v779
          %s781 = sld [smem:[#allocation5 + $0x4a]]
          %v782 = vstv %s781
          %v783 = vmul.f32 %v782, %v768
          %v784 = vadd.f32 %v744, %v783
          %s785 = sld [smem:[#allocation5 + $0x51]]
          %v786 = vstv %s785
          %v787 = vmul.f32 %v786, %v768
          %v788 = vadd.f32 %v748, %v787
          %s789 = sld [smem:[#allocation5 + $0x58]]
          %v790 = vstv %s789
          %v791 = vmul.f32 %v790, %v768
          %v792 = vadd.f32 %v752, %v791
          %s793 = sld [smem:[#allocation5 + $0x5f]]
          %v794 = vstv %s793
          %v795 = vmul.f32 %v794, %v768
          %v796 = vadd.f32 %v756, %v795
          %797 = vrot.lane.b32.xlu0 %v605, 126
          %v798 = vpop.permute.xlu0 %797
          %799 = vrot.lane.b32.xlu0 %v606, 126
          %v800 = vpop.permute.xlu0 %799
          %v801 = vsel %vm526, %v798, %v800
          %v802 = vsel %vm526, %v800, %v798
          %v805 = vrot.slane %v802, 7
          %v806 = vsel %vm346, %v801, %v805
          %v808 = vsel %vm327, %v806, 0.0
          %s809 = sld [smem:[#allocation5 + $0x36]]
          %v810 = vstv %s809
          %v811 = vmul.f32 %v810, %v808
          %v812 = vadd.f32 %v772, %v811
          %s813 = sld [smem:[#allocation5 + $0x3d]]
          %v814 = vstv %s813
          %v815 = vmul.f32 %v814, %v808
          %v816 = vadd.f32 %v776, %v815
          %s817 = sld [smem:[#allocation5 + $0x44]]
          %v818 = vstv %s817
          %v819 = vmul.f32 %v818, %v808
          %v820 = vadd.f32 %v780, %v819
          %s821 = sld [smem:[#allocation5 + $0x4b]]
          %v822 = vstv %s821
          %v823 = vmul.f32 %v822, %v808
          %v824 = vadd.f32 %v784, %v823
          %s825 = sld [smem:[#allocation5 + $0x52]]
          %v826 = vstv %s825
          %v827 = vmul.f32 %v826, %v808
          %v828 = vadd.f32 %v788, %v827
          %s829 = sld [smem:[#allocation5 + $0x59]]
          %v830 = vstv %s829
          %v831 = vmul.f32 %v830, %v808
          %v832 = vadd.f32 %v792, %v831
          %s833 = sld [smem:[#allocation5 + $0x60]]
          %v834 = vstv %s833
          %v835 = vmul.f32 %v834, %v808
          %v836 = vadd.f32 %v796, %v835
          %837 = vrot.lane.b32.xlu0 %v605, 125
          %v838 = vpop.permute.xlu0 %837
          %839 = vrot.lane.b32.xlu0 %v606, 125
          %v840 = vpop.permute.xlu0 %839
          %v841 = vsel %vm567, %v838, %v840
          %v842 = vsel %vm567, %v840, %v838
          %v845 = vrot.slane %v842, 7
          %v846 = vsel %vm346, %v841, %v845
          %v848 = vsel %vm328, %v846, 0.0
          %s849 = sld [smem:[#allocation5 + $0x37]]
          %v850 = vstv %s849
          %v851 = vmul.f32 %v850, %v848
          %v852 = vadd.f32 %v812, %v851
          %s853 = sld [smem:[#allocation5 + $0x3e]]
          %v854 = vstv %s853
          %v855 = vmul.f32 %v854, %v848
          %v856 = vadd.f32 %v816, %v855
          %s857 = sld [smem:[#allocation5 + $0x45]]
          %v858 = vstv %s857
          %v859 = vmul.f32 %v858, %v848
          %v860 = vadd.f32 %v820, %v859
          %s861 = sld [smem:[#allocation5 + $0x4c]]
          %v862 = vstv %s861
          %v863 = vmul.f32 %v862, %v848
          %v864 = vadd.f32 %v824, %v863
          %s865 = sld [smem:[#allocation5 + $0x53]]
          %v866 = vstv %s865
          %v867 = vmul.f32 %v866, %v848
          %v868 = vadd.f32 %v828, %v867
          %s869 = sld [smem:[#allocation5 + $0x5a]]
          %v870 = vstv %s869
          %v871 = vmul.f32 %v870, %v848
          %v872 = vadd.f32 %v832, %v871
          %s873 = sld [smem:[#allocation5 + $0x61]]
          %v874 = vstv %s873
          %v875 = vmul.f32 %v874, %v848
          %v876 = vadd.f32 %v836, %v875
          %v878 = vperm.slane %v852, 0
          %v879 = vperm.slane %v852, 1
          %882 = vrot.lane.b32.xlu0 %v878, 48
          %v883 = vpop.permute.xlu0 %882
          %884 = vrot.lane.b32.xlu0 %v879, 48
          %v885 = vpop.permute.xlu0 %884
          %vm886 = vcmp.lt.s32.totalorder %v339, 48
          %v887 = vsel %vm886, %v883, %v885
          %v888 = vsel %vm886, %v885, %v883
          %vm889 = vcmp.ge.s32.totalorder %v320, 3
          %v892 = vrot.slane %v887, 7
          %v893 = vsel %vm346, %v888, %v892
          %v895 = vsel %vm889, %v893, 0.0
          %v896 = vadd.f32 %v864, %v895
          %v898 = vperm.slane %v856, 0
          %v899 = vperm.slane %v856, 1
          %902 = vrot.lane.b32.xlu0 %v898, 32
          %v903 = vpop.permute.xlu0 %902
          %904 = vrot.lane.b32.xlu0 %v899, 32
          %v905 = vpop.permute.xlu0 %904
          %vm906 = vcmp.lt.s32.totalorder %v339, 32
          %v907 = vsel %vm906, %v903, %v905
          %v908 = vsel %vm906, %v905, %v903
          %vm909 = vcmp.ge.s32.totalorder %v320, 2
          %v912 = vrot.slane %v907, 7
          %v913 = vsel %vm346, %v908, %v912
          %v915 = vsel %vm909, %v913, 0.0
          %v916 = vadd.f32 %v896, %v915
          %v918 = vperm.slane %v860, 0
          %v919 = vperm.slane %v860, 1
          %922 = vrot.lane.b32.xlu0 %v918, 16
          %v923 = vpop.permute.xlu0 %922
          %924 = vrot.lane.b32.xlu0 %v919, 16
          %v925 = vpop.permute.xlu0 %924
          %vm926 = vcmp.lt.s32.totalorder %v339, 16
          %v927 = vsel %vm926, %v923, %v925
          %v928 = vsel %vm926, %v925, %v923
          %vm929 = vcmp.ge.s32.totalorder %v320, 1
          %v932 = vrot.slane %v927, 7
          %v933 = vsel %vm346, %v928, %v932
          %v935 = vsel %vm929, %v933, 0.0
          %v936 = vadd.f32 %v916, %v935
          %v938 = vperm.slane %v868, 0
          %v939 = vperm.slane %v868, 1
          %942 = vrot.lane.b32.xlu0 %v938, 112
          %v943 = vpop.permute.xlu0 %942
          %944 = vrot.lane.b32.xlu0 %v939, 112
          %v945 = vpop.permute.xlu0 %944
          %vm946 = vcmp.lt.s32.totalorder %v339, 112
          %v947 = vsel %vm946, %v943, %v945
          %v948 = vsel %vm946, %v945, %v943
          %vm949 = vcmp.lt.s32.totalorder %v320, 15
          %v952 = vrot.slane %v948, 7
          %v953 = vsel %vm346, %v947, %v952
          %v955 = vsel %vm949, %v953, 0.0
          %v956 = vadd.f32 %v936, %v955
          %v958 = vperm.slane %v872, 0
          %v959 = vperm.slane %v872, 1
          %962 = vrot.lane.b32.xlu0 %v958, 96
          %v963 = vpop.permute.xlu0 %962
          %964 = vrot.lane.b32.xlu0 %v959, 96
          %v965 = vpop.permute.xlu0 %964
          %vm966 = vcmp.lt.s32.totalorder %v339, 96
          %v967 = vsel %vm966, %v963, %v965
          %v968 = vsel %vm966, %v965, %v963
          %vm969 = vcmp.lt.s32.totalorder %v320, 14
          %v972 = vrot.slane %v968, 7
          %v973 = vsel %vm346, %v967, %v972
          %v975 = vsel %vm969, %v973, 0.0
          %v976 = vadd.f32 %v956, %v975
          %v978 = vperm.slane %v876, 0
          %v979 = vperm.slane %v876, 1
          %982 = vrot.lane.b32.xlu0 %v978, 80
          %v983 = vpop.permute.xlu0 %982
          %984 = vrot.lane.b32.xlu0 %v979, 80
          %v985 = vpop.permute.xlu0 %984
          %vm986 = vcmp.lt.s32.totalorder %v339, 80
          %v987 = vsel %vm986, %v983, %v985
          %v988 = vsel %vm986, %v985, %v983
          %vm989 = vcmp.lt.s32.totalorder %v320, 13
          %v992 = vrot.slane %v988, 7
          %v993 = vsel %vm346, %v987, %v992
          %v995 = vsel %vm989, %v993, 0.0
          %v996 = vadd.f32 %v976, %v995
          %v997 = vxor.u32 %v996, 2147483648
          %v998 = vmul.f32 %v997, 1.442695
          %v999 = vpow.pop %v998
          %v1000 = vadd.f32 %v999, 1.0
          %v1001 = vrcp.pop %v1000
          %v1002 = vmul.f32 %v1000, %v1001
          %v1003 = vsub.f32 1.0, %v1002
          %v1004 = vmul.f32 %v1001, %v1003
          %v1005 = vadd.f32 %v1001, %v1004
          %vm1006 = vweird.f32 %v1000
          %vm1007 = vweird.f32 %v1001
          %vm1008 = vmor %vm1006, %vm1007
          %v1009 = vsel %vm1008, %v1001, %v1005
          %v1010 = vand.u32 2147483647, %v1000
          %vm1011 = vcmp.eq.f32.partialorder %v1010, 8.507059e+37
          %v1012 = vand.u32 %v1000, 2147483648
          %v1013 = vor.u32 1.1754944e-38, %v1012
          %v1014 = vsel %vm1011, %v1013, %v1009
          %v1015 = vmul.f32 1.0, %v1014
          %v1016 = vlaneseq
          %vm1017 = vcmp.ge.s32.totalorder %v1016, 0
          %vm1018 = vcmp.lt.s32.totalorder %v1016, 256
          %vm1019 = vmand %vm1017, %vm1018
          %1020 = vst.msk [vmem:[%s228] sm:$0x3] %vm1019, %v1015
        $region52: #{tpu_custom_call.1} parent=31 // pred_fallthru
          _
        %s1021 = sand.u32 %s120, 1
        %s1022 = scalar_lea.sflag [#allocation8], %s1021
        %s1023 = sand.u32 %s120, 1
        %s1024 = smul.addr %s1023, 2
        %s1025 = scalar_lea.vmem [#allocation11], %s1024
        // Predicated region
        $region53: #{tpu_custom_call.1} parent=31 // pred_check
          %p1026 = pneg %p130
        $region54: #{tpu_custom_call.1} parent=31 // pred_check_branch
          %1028 = sbr.rel (%p1026) target = $region56
        $region55: #{tpu_custom_call.1} parent=31 // pred_region
          %1030 = vsyncadd %s1022, 0
          %s1031 = smul.addr %s34, 2
          %s1032 = scalar_lea.hbm %s4, %s1031
          %s1034 = sshll.u32 %s1025, 4
          %s1035 = int_to_ptr.vmem [resolvable:$true] %s1034
          %s1036 = sshll.u32 %s1032, 4
          %s1037 = int_to_ptr.hbm [resolvable:$true] %s1036
          %1039 = dma.vmem_to_hbm [thread:$0]  %s1035, 32, %s1037, %s1022
        $region56: #{tpu_custom_call.1} parent=31 // pred_fallthru
          _
      $region32: #{tpu_custom_call.1} parent=5 // pred_fallthru
        _
      %p1040 = scmp.le.s32.totalorder 2, %s25
      // Predicated region
      $region57: #{tpu_custom_call.1} parent=5 // pred_check
        %p1041 = pneg %p1040
      $region58: #{tpu_custom_call.1} parent=5 // pred_check_branch
        %1043 = sbr.rel (%p1041) target = $region60
      $region59: #{tpu_custom_call.1} parent=5 // pred_region
        %s1044 = ssub.s32 %s25, 2
        // Predicated region
        $region61: #{tpu_custom_call.1} parent=59 // pred_check
          %p1045 = pneg %p136
        $region62: #{tpu_custom_call.1} parent=59 // pred_check_branch
          %1047 = sbr.rel (%p1045) target = $region64
        $region63: #{tpu_custom_call.1} parent=59 // pred_region
          %s1048 = sand.u32 %s121, 1
          %s1049 = scalar_lea.sflag [#allocation8], %s1048
          %s1050 = sand.u32 %s121, 1
          %s1051 = smul.addr %s1050, 2
          %s1052 = scalar_lea.vmem [#allocation11], %s1051
          %1054 = dma.done %s1049, 32
        $region64: #{tpu_custom_call.1} parent=59 // pred_fallthru
          _
      $region60: #{tpu_custom_call.1} parent=5 // pred_fallthru
        _
    $region6: #{tpu_custom_call.1} parent=1 // loop_footer
      %s29 = sadd.s32 1, %s25
    $region7: #{tpu_custom_call.1} parent=1 // loop_footer_branch
      %24 = sbr.rel target = $region3
    $region8: #{tpu_custom_call.1} parent=1 // loop_exit
      _
    %1055 = vsyncpa [#allocation7], 1
    %s1056 = scalar_lea.sflag [#allocation7], 1
    %1057 = vsyncpa %s1056, 1
    %1058 = vsyncpa [#allocation10], 1
    %1059 = vsyncpa [#allocation8], 1
    %s1060 = scalar_lea.sflag [#allocation8], 1
    %1061 = vsyncpa %s1060, 1

</llo_original>
